<compile_context>
chip_gen: v5e
topology: v5e:2x2
jax: 0.10.0
libtpu: 0.0.40
codegen_flags: <defaults>
</compile_context>

<pallas_src>
import jax
import jax.numpy as jnp
from jax.experimental import pallas as pl
from jax.experimental.pallas import tpu as pltpu


def stage12_kernel(pred_ref, ref_ref,      # (NP*B, C) point-major activations, f32
                   w0_ref, b0_ref,         # linearK: (C, cout) f32, (1, cout) f32
                   w1_ref, b1_ref,         # map0 tiles: (NP*cout, th1) bf16, (1, th1) f32
                   h1_ref,                 # (B, th1) f32 output block (resident over K axis)
                   flat_ref):              # (B, NP*cout) bf16 VMEM scratch
    k = pl.program_id(1)
    B = h1_ref.shape[0]
    cout = w0_ref.shape[1]
    NP = pred_ref.shape[0] // B            # points handled this grid step

    @pl.when(k == 0)
    def _():                                # init resident output with the bias
        h1_ref[...] = jnp.broadcast_to(b1_ref[...], h1_ref.shape)

    # ---- stage 1: linearK over this chunk of NP points, all batches at once ----
    r = pred_ref[...] - ref_ref[...]                                   # (NP*B, C) f32
    x = jnp.maximum(r, 0.0)                                            # Sequential's ReLU
    x = jnp.dot(x, w0_ref[...], preferred_element_type=jnp.float32) + b0_ref[...]
    x = jnp.maximum(x, 0.0)                                            # mapping's first ReLU
    xc = x.astype(flat_ref.dtype)                                      # single bf16 cast

    # ---- relayout (NP*B, cout) -> (B, NP*cout): PyTorch view(B, -1), (n, c) order ----
    for p in range(NP):                    # static unroll, lane-aligned stores
        flat_ref[:, p * cout:(p + 1) * cout] = xc[p * B:(p + 1) * B, :]

    # ---- stage 2: partial K-contraction against this tile of map0_w ----
    h1_ref[...] += jnp.dot(flat_ref[...], w1_ref[...],
                           preferred_element_type=jnp.float32)         # (B, th1) f32


def tail_kernel(h1_ref, w2_ref, b2_ref, w3_ref, b3_ref, y_ref):
    h2 = jnp.dot(jnp.maximum(h1_ref[...], 0.0), w2_ref[...],
                 preferred_element_type=jnp.float32) + b2_ref[...]     # (B, 32)
    h3 = jnp.dot(jnp.maximum(h2, 0.0), w3_ref[...],
                 preferred_element_type=jnp.float32) + b3_ref[...]     # (B, yout)
    y_ref[...] = jnp.tanh(h3).astype(y_ref.dtype)


def _points_per_step(N, cout, max_k_tile):
    """Pick NP (points per grid step) and the padded point count N_pad.

    NP is always a multiple of 8 so the (NP*B, C) block's sublane dim is aligned for
    ANY batch size; NP*cout <= max_k_tile whenever that still allows NP >= 8.
    """
    np_cap = max(8, (max_k_tile // cout) // 8 * 8)
    n_up = -(-N // 8) * 8                  # round N up to a multiple of 8
    NP = min(np_cap, n_up)
    N_pad = -(-N // NP) * NP
    return NP, N_pad


def nnrefine_forward(pred_feat, ref_feat, scale, params, *,
                     weight_dtype=jnp.bfloat16, max_k_tile=4096, n_h1_blocks=2):
    """JAX wrapper reproducing NNrefinev0_1.forward (args.input='res', pool='none')."""
    B, N, C = pred_feat.shape
    k = 2 - scale                           # static python int, same branch as PyTorch
    w0 = params[f"linear{k}_w"].astype(jnp.float32)
    b0 = params[f"linear{k}_b"].astype(jnp.float32)
    assert w0.shape[0] == C, "feature channels must match the selected linear"
    cout = w0.shape[1]
    w1 = params["map0_w"].astype(weight_dtype)   # only the dominant stream goes bf16
    b1 = params["map0_b"].astype(jnp.float32)
    w2 = params["map1_w"].astype(jnp.float32)
    b2 = params["map1_b"].astype(jnp.float32)
    w3 = params["map2_w"].astype(jnp.float32)
    b3 = params["map2_b"].astype(jnp.float32)
    H1 = w1.shape[1]
    yout = w3.shape[1]

    assert H1 % n_h1_blocks == 0 and (H1 // n_h1_blocks) % 128 == 0
    th1 = H1 // n_h1_blocks

    NP, N_pad = _points_per_step(N, cout, max_k_tile)

    # Point-major layout so each K step sees a contiguous (NP*B, C) slab.
    pred2 = jnp.transpose(pred_feat, (1, 0, 2)).reshape(N * B, C)
    ref2 = jnp.transpose(ref_feat, (1, 0, 2)).reshape(N * B, C)
    if N_pad != N:
        pad_rows = (N_pad - N) * B
        pred2 = jnp.pad(pred2, ((0, pad_rows), (0, 0)))
        ref2 = jnp.pad(ref2, ((0, pad_rows), (0, 0)))
        # Zero rows of map0_w make padded points inert in the K-accumulation.
        w1 = jnp.pad(w1, ((0, (N_pad - N) * cout), (0, 0)))

    itemsize = jnp.dtype(weight_dtype).itemsize
    w1_tile_bytes = NP * cout * th1 * itemsize
    io_tile_bytes = NP * B * C * 4
    vmem_budget = (2 * w1_tile_bytes            # double-buffered map0_w tile
                   + 2 * 2 * io_tile_bytes      # pred + ref, double-buffered
                   + B * NP * cout * itemsize   # flat scratch (bf16)
                   + 2 * B * th1 * 4            # resident h1 output block
                   + (C * cout + cout + th1) * 4
                   + (4 << 20))                 # headroom
    vmem_limit = int(min(max(vmem_budget, 16 << 20), 48 << 20))

    def full(a):
        return pl.BlockSpec(a.shape, lambda j, kk: (0,) * a.ndim)

    grid_spec = pltpu.PrefetchScalarGridSpec(
        num_scalar_prefetch=0,
        grid=(n_h1_blocks, N_pad // NP),        # (parallel H1 blocks, arbitrary K/point)
        in_specs=[
            pl.BlockSpec((NP * B, C), lambda j, kk: (kk, 0)),        # pred chunk
            pl.BlockSpec((NP * B, C), lambda j, kk: (kk, 0)),        # ref  chunk
            full(w0), full(b0),
            pl.BlockSpec((NP * cout, th1), lambda j, kk: (kk, j)),   # map0_w tile
            pl.BlockSpec((1, th1), lambda j, kk: (0, j)),            # map0_b tile
        ],
        out_specs=pl.BlockSpec((B, th1), lambda j, kk: (0, j)),
        scratch_shapes=[pltpu.VMEM((B, NP * cout), weight_dtype)],   # bf16 flat scratch
    )

    h1 = pl.pallas_call(
        stage12_kernel,
        out_shape=jax.ShapeDtypeStruct((B, H1), jnp.float32),
        grid_spec=grid_spec,
        compiler_params=pltpu.CompilerParams(
            dimension_semantics=("parallel", "arbitrary"),
            vmem_limit_bytes=vmem_limit,
        ),
    )(pred2, ref2, w0, b0, w1, b1)

    # Tiny tail (1024 -> 32 -> yout -> tanh): single-shot, everything fits in VMEM.
    y = pl.pallas_call(
        tail_kernel,
        out_shape=jax.ShapeDtypeStruct((B, yout), jnp.float32),
    )(h1, w2, b2, w3, b3)
    return y


def ref_forward(pred_feat, ref_feat, scale, params):
    """Pure-JAX f32 reference (mirrors the PyTorch forward)."""
    B, N, C = pred_feat.shape
    k = 2 - scale
    w0, b0 = params[f"linear{k}_w"], params[f"linear{k}_b"]
    r = pred_feat - ref_feat
    x = jnp.maximum(r, 0.0) @ w0 + b0                 # Sequential(ReLU, Linear)
    x = x.reshape(B, -1)                              # view(B, -1) -> (n, c) order
    h1 = jnp.maximum(x, 0.0) @ params["map0_w"] + params["map0_b"]
    h2 = jnp.maximum(h1, 0.0) @ params["map1_w"] + params["map1_b"]
    h3 = jnp.maximum(h2, 0.0) @ params["map2_w"] + params["map2_b"]
    return jnp.tanh(h3)


def make_params(key, N, cout=128, yout=6):
    """Deterministic synthetic parameters with the shapes implied by __init__."""
    cin = [128, 128, 32]
    ks = iter(jax.random.split(key, 16))
    p = {}
    for i, c in enumerate(cin):
        p[f"linear{i}_w"] = 0.05 * jax.random.normal(next(ks), (c, cout), jnp.float32)
        p[f"linear{i}_b"] = 0.05 * jax.random.normal(next(ks), (1, cout), jnp.float32)
    p["map0_w"] = 0.02 * jax.random.normal(next(ks), (cout * N, 1024), jnp.float32)
    p["map0_b"] = 0.02 * jax.random.normal(next(ks), (1, 1024), jnp.float32)
    p["map1_w"] = 0.02 * jax.random.normal(next(ks), (1024, 32), jnp.float32)
    p["map1_b"] = 0.02 * jax.random.normal(next(ks), (1, 32), jnp.float32)
    p["map2_w"] = 0.1 * jax.random.normal(next(ks), (32, yout), jnp.float32)
    p["map2_b"] = 0.1 * jax.random.normal(next(ks), (1, yout), jnp.float32)
    return p


if __name__ == "__main__":
    key = jax.random.PRNGKey(0)

    # Case 1: scale=2 -> linear0 branch (C=128), N already a multiple of 8.
    B, N, C = 2, 8, 128
    kp, kx, ky, kp2, kx2, ky2 = jax.random.split(key, 6)
    params = make_params(kp, N)
    pred_feat = jax.random.normal(kx, (B, N, C), jnp.float32)
    ref_feat = jax.random.normal(ky, (B, N, C), jnp.float32)
    y = jax.block_until_ready(nnrefine_forward(pred_feat, ref_feat, 2, params))
    y_ref = jax.block_until_ready(ref_forward(pred_feat, ref_feat, 2, params))
    assert y.shape == (B, 6), y.shape
    assert jnp.allclose(y, y_ref, atol=1e-2, rtol=1e-2), (y, y_ref)

    # Case 2: scale=0 -> linear2 branch (C=32), N=12 exercises the point-padding path.
    N2, C2 = 12, 32
    params2 = make_params(kp2, N2)
    pred2 = jax.random.normal(kx2, (B, N2, C2), jnp.float32)
    ref2 = jax.random.normal(ky2, (B, N2, C2), jnp.float32)
    y2 = jax.block_until_ready(nnrefine_forward(pred2, ref2, 0, params2))
    y2_ref = jax.block_until_ready(ref_forward(pred2, ref2, 0, params2))
    assert y2.shape == (B, 6), y2.shape
    assert jnp.allclose(y2, y2_ref, atol=1e-2, rtol=1e-2), (y2, y2_ref)

    print("KERNEL_OK")
</pallas_src>

<mosaic_0001>
module attributes {stable_mosaic.version = 11 : i64} {
  func.func @stage12_kernel(%arg0: i32, %arg1: i32, %arg2: memref<16x128xf32, #tpu.memory_space<vmem>>, %arg3: memref<16x128xf32, #tpu.memory_space<vmem>>, %arg4: memref<128x128xf32, #tpu.memory_space<vmem>>, %arg5: memref<1x128xf32, #tpu.memory_space<vmem>>, %arg6: memref<1024x512xbf16, #tpu.memory_space<vmem>>, %arg7: memref<1x512xf32, #tpu.memory_space<vmem>>, %arg8: memref<2x512xf32, #tpu.memory_space<vmem>>, %arg9: memref<2x1024xbf16, #tpu.memory_space<vmem>>) attributes {dimension_semantics = [#tpu.dimension_semantics<parallel>, #tpu.dimension_semantics<arbitrary>], iteration_bounds = array<i64: 2, 1>, scalar_prefetch = 0 : i64, scratch_operands = 1 : i64, tpu.core_type = #tpu.core_type<tc>, window_params = [{transform_indices = @transform_0, window_bounds = array<i64: 16, 128>}, {transform_indices = @transform_1, window_bounds = array<i64: 16, 128>}, {pipeline_mode = #tpu.pipeline_mode<synchronous>, transform_indices = @transform_2, window_bounds = array<i64: 128, 128>}, {pipeline_mode = #tpu.pipeline_mode<synchronous>, transform_indices = @transform_3, window_bounds = array<i64: 1, 128>}, {transform_indices = @transform_4, window_bounds = array<i64: 1024, 512>}, {transform_indices = @transform_5, window_bounds = array<i64: 1, 512>}, {transform_indices = @transform_6, window_bounds = array<i64: 2, 512>}]} {
    %c0_i32 = arith.constant 0 : i32
    %0 = arith.cmpi eq, %arg1, %c0_i32 : i32
    %1 = arith.extui %0 : i1 to i32
    %c0_i32_0 = arith.constant 0 : i32
    %2 = arith.cmpi ne, %1, %c0_i32_0 : i32
    scf.if %2 {
      %c0_28 = arith.constant 0 : index
      %c0_29 = arith.constant 0 : index
      %38 = vector.load %arg7[%c0_28, %c0_29] : memref<1x512xf32, #tpu.memory_space<vmem>>, vector<1x512xf32>
      %39 = vector.shape_cast %38 : vector<1x512xf32> to vector<1x512xf32>
      %40 = vector.broadcast %39 : vector<1x512xf32> to vector<2x512xf32>
      %c0_30 = arith.constant 0 : index
      %c0_31 = arith.constant 0 : index
      %41 = vector.load %arg8[%c0_30, %c0_31] : memref<2x512xf32, #tpu.memory_space<vmem>>, vector<2x512xf32>
      tpu.vector_store %arg8[%c0_30, %c0_31], %40 {strides = array<i32>} : memref<2x512xf32, #tpu.memory_space<vmem>>, vector<2x512xf32>,
    } else {
    }
    %c0 = arith.constant 0 : index
    %c0_1 = arith.constant 0 : index
    %3 = vector.load %arg2[%c0, %c0_1] : memref<16x128xf32, #tpu.memory_space<vmem>>, vector<16x128xf32>
    %c0_2 = arith.constant 0 : index
    %c0_3 = arith.constant 0 : index
    %4 = vector.load %arg3[%c0_2, %c0_3] : memref<16x128xf32, #tpu.memory_space<vmem>>, vector<16x128xf32>
    %5 = arith.subf %3, %4 : vector<16x128xf32>
    %cst = arith.constant 0.000000e+00 : f32
    %6 = vector.broadcast %cst : f32 to vector<16x128xf32>
    %7 = arith.maximumf %5, %6 : vector<16x128xf32>
    %c0_4 = arith.constant 0 : index
    %c0_5 = arith.constant 0 : index
    %8 = vector.load %arg4[%c0_4, %c0_5] : memref<128x128xf32, #tpu.memory_space<vmem>>, vector<128x128xf32>
    %cst_6 = arith.constant dense<0.000000e+00> : vector<16x128xf32>
    %9 = tpu.matmul %7, %8, %cst_6 {dimension_numbers = #tpu.dot_dimension_numbers<[1], [0], [0], [1], [0, 0, 1, 1], [], []>} : vector<16x128xf32>, vector<128x128xf32>, vector<16x128xf32> -> vector<16x128xf32>
    %c0_7 = arith.constant 0 : index
    %c0_8 = arith.constant 0 : index
    %10 = vector.load %arg5[%c0_7, %c0_8] : memref<1x128xf32, #tpu.memory_space<vmem>>, vector<1x128xf32>
    %11 = vector.broadcast %10 : vector<1x128xf32> to vector<16x128xf32>
    %12 = arith.addf %9, %11 : vector<16x128xf32>
    %cst_9 = arith.constant 0.000000e+00 : f32
    %13 = vector.broadcast %cst_9 : f32 to vector<16x128xf32>
    %14 = arith.maximumf %12, %13 : vector<16x128xf32>
    %15 = arith.truncf %14 : vector<16x128xf32> to vector<16x128xbf16>
    %16 = vector.extract_strided_slice %15 {offsets = [0, 0], sizes = [2, 128], strides = [1, 1]} : vector<16x128xbf16> to vector<2x128xbf16>
    %c0_10 = arith.constant 0 : index
    %c0_11 = arith.constant 0 : index
    %17 = vector.load %arg9[%c0_10, %c0_11] : memref<2x1024xbf16, #tpu.memory_space<vmem>>, vector<2x128xbf16>
    tpu.vector_store %arg9[%c0_10, %c0_11], %16 {strides = array<i32>} : memref<2x1024xbf16, #tpu.memory_space<vmem>>, vector<2x128xbf16>,
    %18 = vector.extract_strided_slice %15 {offsets = [2, 0], sizes = [2, 128], strides = [1, 1]} : vector<16x128xbf16> to vector<2x128xbf16>
    %c0_12 = arith.constant 0 : index
    %c128 = arith.constant 128 : index
    %19 = vector.load %arg9[%c0_12, %c128] : memref<2x1024xbf16, #tpu.memory_space<vmem>>, vector<2x128xbf16>
    tpu.vector_store %arg9[%c0_12, %c128], %18 {strides = array<i32>} : memref<2x1024xbf16, #tpu.memory_space<vmem>>, vector<2x128xbf16>,
    %20 = vector.extract_strided_slice %15 {offsets = [4, 0], sizes = [2, 128], strides = [1, 1]} : vector<16x128xbf16> to vector<2x128xbf16>
    %c0_13 = arith.constant 0 : index
    %c256 = arith.constant 256 : index
    %21 = vector.load %arg9[%c0_13, %c256] : memref<2x1024xbf16, #tpu.memory_space<vmem>>, vector<2x128xbf16>
    tpu.vector_store %arg9[%c0_13, %c256], %20 {strides = array<i32>} : memref<2x1024xbf16, #tpu.memory_space<vmem>>, vector<2x128xbf16>,
    %22 = vector.extract_strided_slice %15 {offsets = [6, 0], sizes = [2, 128], strides = [1, 1]} : vector<16x128xbf16> to vector<2x128xbf16>
    %c0_14 = arith.constant 0 : index
    %c384 = arith.constant 384 : index
    %23 = vector.load %arg9[%c0_14, %c384] : memref<2x1024xbf16, #tpu.memory_space<vmem>>, vector<2x128xbf16>
    tpu.vector_store %arg9[%c0_14, %c384], %22 {strides = array<i32>} : memref<2x1024xbf16, #tpu.memory_space<vmem>>, vector<2x128xbf16>,
    %24 = vector.extract_strided_slice %15 {offsets = [8, 0], sizes = [2, 128], strides = [1, 1]} : vector<16x128xbf16> to vector<2x128xbf16>
    %c0_15 = arith.constant 0 : index
    %c512 = arith.constant 512 : index
    %25 = vector.load %arg9[%c0_15, %c512] : memref<2x1024xbf16, #tpu.memory_space<vmem>>, vector<2x128xbf16>
    tpu.vector_store %arg9[%c0_15, %c512], %24 {strides = array<i32>} : memref<2x1024xbf16, #tpu.memory_space<vmem>>, vector<2x128xbf16>,
    %26 = vector.extract_strided_slice %15 {offsets = [10, 0], sizes = [2, 128], strides = [1, 1]} : vector<16x128xbf16> to vector<2x128xbf16>
    %c0_16 = arith.constant 0 : index
    %c640 = arith.constant 640 : index
    %27 = vector.load %arg9[%c0_16, %c640] : memref<2x1024xbf16, #tpu.memory_space<vmem>>, vector<2x128xbf16>
    tpu.vector_store %arg9[%c0_16, %c640], %26 {strides = array<i32>} : memref<2x1024xbf16, #tpu.memory_space<vmem>>, vector<2x128xbf16>,
    %28 = vector.extract_strided_slice %15 {offsets = [12, 0], sizes = [2, 128], strides = [1, 1]} : vector<16x128xbf16> to vector<2x128xbf16>
    %c0_17 = arith.constant 0 : index
    %c768 = arith.constant 768 : index
    %29 = vector.load %arg9[%c0_17, %c768] : memref<2x1024xbf16, #tpu.memory_space<vmem>>, vector<2x128xbf16>
    tpu.vector_store %arg9[%c0_17, %c768], %28 {strides = array<i32>} : memref<2x1024xbf16, #tpu.memory_space<vmem>>, vector<2x128xbf16>,
    %30 = vector.extract_strided_slice %15 {offsets = [14, 0], sizes = [2, 128], strides = [1, 1]} : vector<16x128xbf16> to vector<2x128xbf16>
    %c0_18 = arith.constant 0 : index
    %c896 = arith.constant 896 : index
    %31 = vector.load %arg9[%c0_18, %c896] : memref<2x1024xbf16, #tpu.memory_space<vmem>>, vector<2x128xbf16>
    tpu.vector_store %arg9[%c0_18, %c896], %30 {strides = array<i32>} : memref<2x1024xbf16, #tpu.memory_space<vmem>>, vector<2x128xbf16>,
    %c0_19 = arith.constant 0 : index
    %c0_20 = arith.constant 0 : index
    %32 = vector.load %arg8[%c0_19, %c0_20] : memref<2x512xf32, #tpu.memory_space<vmem>>, vector<2x512xf32>
    %c0_21 = arith.constant 0 : index
    %c0_22 = arith.constant 0 : index
    %33 = vector.load %arg9[%c0_21, %c0_22] : memref<2x1024xbf16, #tpu.memory_space<vmem>>, vector<2x1024xbf16>
    %c0_23 = arith.constant 0 : index
    %c0_24 = arith.constant 0 : index
    %34 = vector.load %arg6[%c0_23, %c0_24] : memref<1024x512xbf16, #tpu.memory_space<vmem>>, vector<1024x512xbf16>
    %cst_25 = arith.constant dense<0.000000e+00> : vector<2x512xf32>
    %35 = tpu.matmul %33, %34, %cst_25 {dimension_numbers = #tpu.dot_dimension_numbers<[1], [0], [0], [1], [0, 0, 1, 1], [], []>} : vector<2x1024xbf16>, vector<1024x512xbf16>, vector<2x512xf32> -> vector<2x512xf32>
    %36 = arith.addf %32, %35 : vector<2x512xf32>
    %c0_26 = arith.constant 0 : index
    %c0_27 = arith.constant 0 : index
    %37 = vector.load %arg8[%c0_26, %c0_27] : memref<2x512xf32, #tpu.memory_space<vmem>>, vector<2x512xf32>
    tpu.vector_store %arg8[%c0_26, %c0_27], %36 {strides = array<i32>} : memref<2x512xf32, #tpu.memory_space<vmem>>, vector<2x512xf32>,
    return
  }
  func.func @transform_0(%arg0: i32, %arg1: i32) -> (i32, i32) {
    %c0_i32 = arith.constant 0 : i32
    %c0_i32_0 = arith.constant 0 : i32
    return %arg1, %c0_i32 : i32, i32
  }
  func.func @transform_1(%arg0: i32, %arg1: i32) -> (i32, i32) {
    %c0_i32 = arith.constant 0 : i32
    %c0_i32_0 = arith.constant 0 : i32
    return %arg1, %c0_i32 : i32, i32
  }
  func.func @transform_2(%arg0: i32, %arg1: i32) -> (i32, i32) {
    %c0_i32 = arith.constant 0 : i32
    %c0_i32_0 = arith.constant 0 : i32
    %c0_i32_1 = arith.constant 0 : i32
    return %c0_i32, %c0_i32_0 : i32, i32
  }
  func.func @transform_3(%arg0: i32, %arg1: i32) -> (i32, i32) {
    %c0_i32 = arith.constant 0 : i32
    %c0_i32_0 = arith.constant 0 : i32
    %c0_i32_1 = arith.constant 0 : i32
    return %c0_i32, %c0_i32_0 : i32, i32
  }
  func.func @transform_4(%arg0: i32, %arg1: i32) -> (i32, i32) {
    %c0_i32 = arith.constant 0 : i32
    return %arg1, %arg0 : i32, i32
  }
  func.func @transform_5(%arg0: i32, %arg1: i32) -> (i32, i32) {
    %c0_i32 = arith.constant 0 : i32
    %c0_i32_0 = arith.constant 0 : i32
    return %c0_i32, %arg0 : i32, i32
  }
  func.func @transform_6(%arg0: i32, %arg1: i32) -> (i32, i32) {
    %c0_i32 = arith.constant 0 : i32
    %c0_i32_0 = arith.constant 0 : i32
    return %c0_i32, %arg0 : i32, i32
  }
}

</mosaic_0001>

<llo_original>
// kernel: tpu_custom_call.1
$region0: #{tpu_custom_call.1}
  #allocation0 [shape = 'u32[]', space=smem, size = 0x4, offset = 0x4, fixed_abs, tag = 'smem constant byte address 0x4 - core index']
  #allocation1 [shape = 'u32[72,128]{1,0:T(1,128)}', space=vmem, size = 0x9000, scoped, tag = 'internal scratch']
  #allocation2 [shape = 'bf16[2,1024]{1,0:T(2,128)(2,1)}', space=vmem, size = 0x1000, scoped, tag = 'scratch operand']
  %s0 = inlined_call_operand.hbm [shape: f32[16,128], index: 0, kind: input, shape index: {}]
  %s1 = inlined_call_operand.hbm [shape: f32[16,128], index: 1, kind: input, shape index: {}]
  %s2 = inlined_call_operand.hbm [shape: f32[128,128], index: 2, kind: input, shape index: {}]
  %s3 = inlined_call_operand.hbm [shape: f32[1,128], index: 3, kind: input, shape index: {}]
  %s4 = inlined_call_operand.hbm [shape: bf16[1024,1024], index: 4, kind: input, shape index: {}]
  %s5 = inlined_call_operand.hbm [shape: f32[1,1024], index: 5, kind: input, shape index: {}]
  %s6 = inlined_call_operand.hbm [shape: f32[2,1024], index: 6, kind: output, shape index: {}]
  %s7 = sld [smem:[#allocation0]]
  $region85: #{tpu_custom_call.1} parent=0
    _
  %s9 = ssub.s32 1, %s7
  %s10 = scalar_select 0, %s9, %s7
  $region1: #{tpu_custom_call.1} parent=0
    #allocation3 [shape = 'u8[8192]{0}', space=vmem, size = 0x2000, scoped, tag = 'input window, operand 0, single buffered']
    #allocation4 [shape = 's32[2]{0}', space=sflag, size = 0x8, scoped, tag = 'scoped memory for tpu_custom_call.1']
    #allocation5 [shape = 's32[2]{0}', space=sflag, size = 0x8, scoped, tag = 'scoped memory for tpu_custom_call.1']
    #allocation6 [shape = 'u8[8192]{0}', space=vmem, size = 0x2000, scoped, tag = 'input window, operand 1, single buffered']
    #allocation7 [shape = 's32[1]{0}', space=sflag, size = 0x4, scoped, tag = 'scoped memory for tpu_custom_call.1']
    #allocation8 [shape = 'u8[65536]{0}', space=vmem, size = 0x10000, scoped, tag = 'input window, operand 2, single buffered']
    #allocation9 [shape = 'u8[512]{0}', space=vmem, size = 0x400, scoped, tag = 'input window, operand 3, single buffered']
    #allocation10 [shape = 's32[1]{0}', space=sflag, size = 0x4, scoped, tag = 'scoped memory for tpu_custom_call.1']
    #allocation11 [shape = 'u8[2097152]{0}', space=vmem, size = 0x200000, scoped, tag = 'input window, operand 4']
    #allocation12 [shape = 'u8[4096]{0}', space=vmem, size = 0x1000, scoped, tag = 'input window, operand 5']
    #allocation13 [shape = 'u8[8192]{0}', space=vmem, size = 0x2000, scoped, tag = 'output window, operand 0']
    %11 = vsyncpa [#allocation4], 0
    %12 = vsyncpa [#allocation7], 0
    %13 = vsyncpa [#allocation10], 0
    %14 = vsyncpa [#allocation5], 0
    %s15 = scalar_lea.sflag [#allocation5], 1
    %16 = vsyncpa %s15, 0
    loop: start=0, step=1, limit=4
    $region2: #{tpu_custom_call.1} parent=1 // loop_pre_header
      _
    $region3: #{tpu_custom_call.1} parent=1 // loop_header
      %s18 = sphi 0, %s22
      %p19 = scmp.ge.s32.totalorder %s18, 4
      %s25 = sphi 0, %s37
      %s26 = sphi 0, %s33
      %s27 = sphi 0, %s25
      %s28 = sphi 0, %s26
      %s29 = sphi 0, %s27
      %s30 = sphi 0, %s28
      %s40 = sphi 0, %s42
      %s43 = sphi 0, %s40
      %s44 = sphi 0, %s43
      %s60 = sphi 0, %s44
      %s66 = sphi 0, %s68
      %s69 = sphi 0, %s66
      %s70 = sphi 0, %s69
      %s86 = sphi 0, %s70
      %s90 = sphi 0, %s90
      %s92 = sphi 0, %s90
      %s93 = sphi 0, %s92
      %s107 = sphi 0, %s93
      %s111 = sphi 0, %s111
      %s113 = sphi 0, %s111
      %s114 = sphi 0, %s113
      %s128 = sphi 0, %s114
      %s136 = sphi 0, %s138
      %s139 = sphi 0, %s136
      %s140 = sphi 0, %s139
      %s156 = sphi 0, %s140
      %s162 = sphi 0, %s164
      %s165 = sphi 0, %s162
      %s166 = sphi 0, %s165
      %s182 = sphi 0, %s166
      %s188 = sphi 0, %s190
      %s191 = sphi 0, %s188
      %s192 = sphi 0, %s191
      %s208 = sphi 0, %s192
    $region4: #{tpu_custom_call.1} parent=1 // loop_header_branch
      %21 = sbr.rel (%p19) target = $region8
    $region5: #{tpu_custom_call.1} parent=1 // loop_body
      %s23 = ssub.s32 %s18, 1
      %s24 = ssub.s32 %s18, 2
      %s31 = sadd.s32 1, %s26
      %p32 = scmp.ge.s32.totalorder %s31, 1
      %s33 = scalar_select %p32, 0, %s31
      %s34 = sadd.s32 1, %s25
      %s35 = scalar_select %p32, %s34, %s25
      %p36 = scmp.ge.s32.totalorder %s35, 2
      %s37 = scalar_select %p36, 0, %s35
      %s38 = ssub.s32 %s26, %s33
      %p39 = scmp.eq.s32.totalorder %s38, 0
      %s41 = sadd.s32 %s40, 1
      %s42 = scalar_select %p39, %s40, %s41
      %p45 = pneg %p39
      %p46 = scmp.eq.s32.totalorder %s18, 1
      %p47 = por %p45, %p46
      %p48 = scmp.ne.s32.totalorder %s40, %s43
      %p49 = scmp.eq.s32.totalorder %s18, 0
      %p50 = por %p48, %p49
      %p51 = scmp.ne.s32.totalorder %s40, %s43
      %p52 = scmp.eq.s32.totalorder %s23, 1
      %p53 = por %p51, %p52
      %p54 = scmp.ne.s32.totalorder %s43, %s44
      %p55 = scmp.eq.s32.totalorder %s23, 0
      %p56 = por %p54, %p55
      %p57 = scmp.ne.s32.totalorder %s43, %s44
      %p58 = scmp.eq.s32.totalorder %s24, 1
      %p59 = por %p57, %p58
      %p61 = scmp.ne.s32.totalorder %s44, %s60
      %p62 = scmp.eq.s32.totalorder %s24, 0
      %p63 = por %p61, %p62
      %s64 = ssub.s32 %s26, %s33
      %p65 = scmp.eq.s32.totalorder %s64, 0
      %s67 = sadd.s32 %s66, 1
      %s68 = scalar_select %p65, %s66, %s67
      %p71 = pneg %p65
      %p72 = scmp.eq.s32.totalorder %s18, 1
      %p73 = por %p71, %p72
      %p74 = scmp.ne.s32.totalorder %s66, %s69
      %p75 = scmp.eq.s32.totalorder %s18, 0
      %p76 = por %p74, %p75
      %p77 = scmp.ne.s32.totalorder %s66, %s69
      %p78 = scmp.eq.s32.totalorder %s23, 1
      %p79 = por %p77, %p78
      %p80 = scmp.ne.s32.totalorder %s69, %s70
      %p81 = scmp.eq.s32.totalorder %s23, 0
      %p82 = por %p80, %p81
      %p83 = scmp.ne.s32.totalorder %s69, %s70
      %p84 = scmp.eq.s32.totalorder %s24, 1
      %p85 = por %p83, %p84
      %p87 = scmp.ne.s32.totalorder %s70, %s86
      %p88 = scmp.eq.s32.totalorder %s24, 0
      %p89 = por %p87, %p88
      %s91 = sadd.s32 %s90, 1
      %p94 = scmp.eq.s32.totalorder %s18, 1
      %p95 = scmp.ne.s32.totalorder %s90, %s92
      %p96 = scmp.eq.s32.totalorder %s18, 0
      %p97 = por %p95, %p96
      %p98 = scmp.ne.s32.totalorder %s90, %s92
      %p99 = scmp.eq.s32.totalorder %s23, 1
      %p100 = por %p98, %p99
      %p101 = scmp.ne.s32.totalorder %s92, %s93
      %p102 = scmp.eq.s32.totalorder %s23, 0
      %p103 = por %p101, %p102
      %p104 = scmp.ne.s32.totalorder %s92, %s93
      %p105 = scmp.eq.s32.totalorder %s24, 1
      %p106 = por %p104, %p105
      %p108 = scmp.ne.s32.totalorder %s93, %s107
      %p109 = scmp.eq.s32.totalorder %s24, 0
      %p110 = por %p108, %p109
      %s112 = sadd.s32 %s111, 1
      %p115 = scmp.eq.s32.totalorder %s18, 1
      %p116 = scmp.ne.s32.totalorder %s111, %s113
      %p117 = scmp.eq.s32.totalorder %s18, 0
      %p118 = por %p116, %p117
      %p119 = scmp.ne.s32.totalorder %s111, %s113
      %p120 = scmp.eq.s32.totalorder %s23, 1
      %p121 = por %p119, %p120
      %p122 = scmp.ne.s32.totalorder %s113, %s114
      %p123 = scmp.eq.s32.totalorder %s23, 0
      %p124 = por %p122, %p123
      %p125 = scmp.ne.s32.totalorder %s113, %s114
      %p126 = scmp.eq.s32.totalorder %s24, 1
      %p127 = por %p125, %p126
      %p129 = scmp.ne.s32.totalorder %s114, %s128
      %p130 = scmp.eq.s32.totalorder %s24, 0
      %p131 = por %p129, %p130
      %s132 = ssub.s32 %s26, %s33
      %s133 = ssub.s32 %s25, %s37
      %s134 = sor.u32 %s132, %s133
      %p135 = scmp.eq.s32.totalorder %s134, 0
      %s137 = sadd.s32 %s136, 1
      %s138 = scalar_select %p135, %s136, %s137
      %p141 = pneg %p135
      %p142 = scmp.eq.s32.totalorder %s18, 1
      %p143 = por %p141, %p142
      %p144 = scmp.ne.s32.totalorder %s136, %s139
      %p145 = scmp.eq.s32.totalorder %s18, 0
      %p146 = por %p144, %p145
      %p147 = scmp.ne.s32.totalorder %s136, %s139
      %p148 = scmp.eq.s32.totalorder %s23, 1
      %p149 = por %p147, %p148
      %p150 = scmp.ne.s32.totalorder %s139, %s140
      %p151 = scmp.eq.s32.totalorder %s23, 0
      %p152 = por %p150, %p151
      %p153 = scmp.ne.s32.totalorder %s139, %s140
      %p154 = scmp.eq.s32.totalorder %s24, 1
      %p155 = por %p153, %p154
      %p157 = scmp.ne.s32.totalorder %s140, %s156
      %p158 = scmp.eq.s32.totalorder %s24, 0
      %p159 = por %p157, %p158
      %s160 = ssub.s32 %s25, %s37
      %p161 = scmp.eq.s32.totalorder %s160, 0
      %s163 = sadd.s32 %s162, 1
      %s164 = scalar_select %p161, %s162, %s163
      %p167 = pneg %p161
      %p168 = scmp.eq.s32.totalorder %s18, 1
      %p169 = por %p167, %p168
      %p170 = scmp.ne.s32.totalorder %s162, %s165
      %p171 = scmp.eq.s32.totalorder %s18, 0
      %p172 = por %p170, %p171
      %p173 = scmp.ne.s32.totalorder %s162, %s165
      %p174 = scmp.eq.s32.totalorder %s23, 1
      %p175 = por %p173, %p174
      %p176 = scmp.ne.s32.totalorder %s165, %s166
      %p177 = scmp.eq.s32.totalorder %s23, 0
      %p178 = por %p176, %p177
      %p179 = scmp.ne.s32.totalorder %s165, %s166
      %p180 = scmp.eq.s32.totalorder %s24, 1
      %p181 = por %p179, %p180
      %p183 = scmp.ne.s32.totalorder %s166, %s182
      %p184 = scmp.eq.s32.totalorder %s24, 0
      %p185 = por %p183, %p184
      %s186 = ssub.s32 %s25, %s37
      %p187 = scmp.eq.s32.totalorder %s186, 0
      %s189 = sadd.s32 %s188, 1
      %s190 = scalar_select %p187, %s188, %s189
      %p193 = pneg %p187
      %p194 = scmp.eq.s32.totalorder %s18, 1
      %p195 = por %p193, %p194
      %p196 = scmp.ne.s32.totalorder %s188, %s191
      %p197 = scmp.eq.s32.totalorder %s18, 0
      %p198 = por %p196, %p197
      %p199 = scmp.ne.s32.totalorder %s188, %s191
      %p200 = scmp.eq.s32.totalorder %s23, 1
      %p201 = por %p199, %p200
      %p202 = scmp.ne.s32.totalorder %s191, %s192
      %p203 = scmp.eq.s32.totalorder %s23, 0
      %p204 = por %p202, %p203
      %p205 = scmp.ne.s32.totalorder %s191, %s192
      %p206 = scmp.eq.s32.totalorder %s24, 1
      %p207 = por %p205, %p206
      %p209 = scmp.ne.s32.totalorder %s192, %s208
      %p210 = scmp.eq.s32.totalorder %s24, 0
      %p211 = por %p209, %p210
      %p212 = scmp.le.s32.totalorder 1, %s18
      %p213 = scmp.lt.s32.totalorder %s18, 3
      %p214 = pnand %p212, %p213
      %p215 = pneg %p214
      // Predicated region
      $region9: #{tpu_custom_call.1} parent=5 // pred_check
        _
      $region10: #{tpu_custom_call.1} parent=5 // pred_check_branch
        %217 = sbr.rel (%p214) target = $region12
      $region11: #{tpu_custom_call.1} parent=5 // pred_region
        %s218 = ssub.s32 %s18, 1
        // Predicated region
        $region13: #{tpu_custom_call.1} parent=11 // pred_check
          %p219 = pneg %p56
        $region14: #{tpu_custom_call.1} parent=11 // pred_check_branch
          %221 = sbr.rel (%p219) target = $region16
        $region15: #{tpu_custom_call.1} parent=11 // pred_region
          %s222 = smul.u32 2, %s28
          %224 = vsyncadd [#allocation4], 0
          %s225 = smul.addr %s222, 8
          %s226 = scalar_lea.hbm %s0, %s225
          %s227 = sshll.u32 %s226, 4
          %s228 = int_to_ptr.hbm [resolvable:$true] %s227
          %s229 = sshll.u32 [#allocation3], 4
          %s230 = int_to_ptr.vmem [resolvable:$true] %s229
          %235 = dma.hbm_to_vmem [thread:$0]  %s228, 256, %s230, [#allocation4], 128, 128, 8
        $region16: #{tpu_custom_call.1} parent=11 // pred_fallthru
          _
        // Predicated region
        $region17: #{tpu_custom_call.1} parent=11 // pred_check
          %p236 = pneg %p82
        $region18: #{tpu_custom_call.1} parent=11 // pred_check_branch
          %238 = sbr.rel (%p236) target = $region20
        $region19: #{tpu_custom_call.1} parent=11 // pred_region
          %s239 = smul.u32 2, %s28
          %241 = vsyncadd [#allocation7], 0
          %s242 = smul.addr %s239, 8
          %s243 = scalar_lea.hbm %s1, %s242
          %s244 = sshll.u32 %s243, 4
          %s245 = int_to_ptr.hbm [resolvable:$true] %s244
          %s246 = sshll.u32 [#allocation6], 4
          %s247 = int_to_ptr.vmem [resolvable:$true] %s246
          %252 = dma.hbm_to_vmem [thread:$0]  %s245, 256, %s247, [#allocation7], 128, 128, 8
        $region20: #{tpu_custom_call.1} parent=11 // pred_fallthru
          _
        // Predicated region
        $region21: #{tpu_custom_call.1} parent=11 // pred_check
          %p253 = pneg %p103
        $region22: #{tpu_custom_call.1} parent=11 // pred_check_branch
          %255 = sbr.rel (%p253) target = $region24
        $region23: #{tpu_custom_call.1} parent=11 // pred_region
          %257 = vsyncadd [#allocation7], 0
          %s258 = sshll.u32 %s2, 4
          %s259 = int_to_ptr.hbm [resolvable:$true] %s258
          %s260 = sshll.u32 [#allocation8], 4
          %s261 = int_to_ptr.vmem [resolvable:$true] %s260
          %266 = dma.hbm_to_vmem [thread:$0]  %s259, 2048, %s261, [#allocation7], 128, 128, 8
        $region24: #{tpu_custom_call.1} parent=11 // pred_fallthru
          _
        // Predicated region
        $region25: #{tpu_custom_call.1} parent=11 // pred_check
          %p267 = pneg %p124
        $region26: #{tpu_custom_call.1} parent=11 // pred_check_branch
          %269 = sbr.rel (%p267) target = $region28
        $region27: #{tpu_custom_call.1} parent=11 // pred_region
          %271 = vsyncadd [#allocation10], 0
          %s273 = sshll.u32 %s3, 4
          %s274 = int_to_ptr.hbm [resolvable:$true] %s273
          %s275 = sshll.u32 [#allocation9], 4
          %s276 = int_to_ptr.vmem [resolvable:$true] %s275
          %278 = dma.hbm_to_vmem [thread:$0]  %s274, 16, %s276, [#allocation10]
        $region28: #{tpu_custom_call.1} parent=11 // pred_fallthru
          _
      $region12: #{tpu_custom_call.1} parent=5 // pred_fallthru
        _
      %p279 = scmp.lt.s32.totalorder %s18, 2
      // Predicated region
      $region29: #{tpu_custom_call.1} parent=5 // pred_check
        %p280 = pneg %p279
      $region30: #{tpu_custom_call.1} parent=5 // pred_check_branch
        %282 = sbr.rel (%p280) target = $region32
      $region31: #{tpu_custom_call.1} parent=5 // pred_region
        // Predicated region
        $region33: #{tpu_custom_call.1} parent=31 // pred_check
          %p283 = pneg %p146
        $region34: #{tpu_custom_call.1} parent=31 // pred_check_branch
          %285 = sbr.rel (%p283) target = $region36
        $region35: #{tpu_custom_call.1} parent=31 // pred_region
          %s286 = sand.u32 %s18, 1
          %s287 = scalar_lea.sflag [#allocation4], %s286
          %s288 = sand.u32 %s136, 1
          %s289 = smul.addr %s288, 2048
          %s290 = scalar_lea.vmem [#allocation11], %s289
          %s291 = smul.u32 128, %s26
          %s292 = smul.u32 4, %s25
          %294 = vsyncadd %s287, 0
          %s295 = smul.addr %s291, 8
          %s296 = sadd.s32 %s292, %s295
          %s297 = smul.addr %s296, 4
          %s298 = scalar_lea.hbm %s4, %s297
          %s299 = sshll.u32 %s298, 4
          %s300 = int_to_ptr.hbm [resolvable:$true] %s299
          %s301 = sshll.u32 %s290, 4
          %s302 = int_to_ptr.vmem [resolvable:$true] %s301
          %307 = dma.hbm_to_vmem [thread:$0]  %s300, 32768, %s302, %s287, 512, 256, 16
        $region36: #{tpu_custom_call.1} parent=31 // pred_fallthru
          _
        // Predicated region
        $region37: #{tpu_custom_call.1} parent=31 // pred_check
          %p308 = pneg %p172
        $region38: #{tpu_custom_call.1} parent=31 // pred_check_branch
          %310 = sbr.rel (%p308) target = $region40
        $region39: #{tpu_custom_call.1} parent=31 // pred_region
          %s311 = sand.u32 %s18, 1
          %s312 = scalar_lea.sflag [#allocation4], %s311
          %s313 = sand.u32 %s162, 1
          %s314 = smul.addr %s313, 4
          %s315 = scalar_lea.vmem [#allocation12], %s314
          %s316 = smul.u32 4, %s25
          %318 = vsyncadd %s312, 0
          %s319 = scalar_lea.hbm %s5, %s316
          %s321 = sshll.u32 %s319, 4
          %s322 = int_to_ptr.hbm [resolvable:$true] %s321
          %s323 = sshll.u32 %s315, 4
          %s324 = int_to_ptr.vmem [resolvable:$true] %s323
          %326 = dma.hbm_to_vmem [thread:$0]  %s322, 64, %s324, %s312
        $region40: #{tpu_custom_call.1} parent=31 // pred_fallthru
          _
      $region32: #{tpu_custom_call.1} parent=5 // pred_fallthru
        _
      %p327 = scmp.le.s32.totalorder 1, %s18
      %p328 = scmp.lt.s32.totalorder %s18, 3
      %p329 = pnand %p327, %p328
      %p330 = pneg %p329
      // Predicated region
      $region41: #{tpu_custom_call.1} parent=5 // pred_check
        _
      $region42: #{tpu_custom_call.1} parent=5 // pred_check_branch
        %332 = sbr.rel (%p329) target = $region44
      $region43: #{tpu_custom_call.1} parent=5 // pred_region
        %s333 = ssub.s32 %s18, 1
        // Predicated region
        $region45: #{tpu_custom_call.1} parent=43 // pred_check
          %p334 = pneg %p56
        $region46: #{tpu_custom_call.1} parent=43 // pred_check_branch
          %336 = sbr.rel (%p334) target = $region48
        $region47: #{tpu_custom_call.1} parent=43 // pred_region
          %338 = dma.done [#allocation4], 256
        $region48: #{tpu_custom_call.1} parent=43 // pred_fallthru
          _
        // Predicated region
        $region49: #{tpu_custom_call.1} parent=43 // pred_check
          %p339 = pneg %p82
        $region50: #{tpu_custom_call.1} parent=43 // pred_check_branch
          %341 = sbr.rel (%p339) target = $region52
        $region51: #{tpu_custom_call.1} parent=43 // pred_region
          %343 = dma.done [#allocation7], 256
        $region52: #{tpu_custom_call.1} parent=43 // pred_fallthru
          _
        // Predicated region
        $region53: #{tpu_custom_call.1} parent=43 // pred_check
          %p344 = pneg %p103
        $region54: #{tpu_custom_call.1} parent=43 // pred_check_branch
          %346 = sbr.rel (%p344) target = $region56
        $region55: #{tpu_custom_call.1} parent=43 // pred_region
          %348 = dma.done [#allocation7], 2048
        $region56: #{tpu_custom_call.1} parent=43 // pred_fallthru
          _
        // Predicated region
        $region57: #{tpu_custom_call.1} parent=43 // pred_check
          %p349 = pneg %p124
        $region58: #{tpu_custom_call.1} parent=43 // pred_check_branch
          %351 = sbr.rel (%p349) target = $region60
        $region59: #{tpu_custom_call.1} parent=43 // pred_region
          %353 = dma.done [#allocation10], 16
        $region60: #{tpu_custom_call.1} parent=43 // pred_fallthru
          _
        %s354 = sand.u32 %s23, 1
        %s355 = scalar_lea.sflag [#allocation4], %s354
        %s356 = sand.u32 %s139, 1
        %s357 = smul.addr %s356, 2048
        %s358 = scalar_lea.vmem [#allocation11], %s357
        // Predicated region
        $region61: #{tpu_custom_call.1} parent=43 // pred_check
          %p359 = pneg %p152
        $region62: #{tpu_custom_call.1} parent=43 // pred_check_branch
          %361 = sbr.rel (%p359) target = $region64
        $region63: #{tpu_custom_call.1} parent=43 // pred_region
          %363 = dma.done %s355, 32768
        $region64: #{tpu_custom_call.1} parent=43 // pred_fallthru
          _
        %s364 = sand.u32 %s23, 1
        %s365 = scalar_lea.sflag [#allocation4], %s364
        %s366 = sand.u32 %s165, 1
        %s367 = smul.addr %s366, 4
        %s368 = scalar_lea.vmem [#allocation12], %s367
        // Predicated region
        $region65: #{tpu_custom_call.1} parent=43 // pred_check
          %p369 = pneg %p178
        $region66: #{tpu_custom_call.1} parent=43 // pred_check_branch
          %371 = sbr.rel (%p369) target = $region68
        $region67: #{tpu_custom_call.1} parent=43 // pred_region
          %373 = dma.done %s365, 64
        $region68: #{tpu_custom_call.1} parent=43 // pred_fallthru
          _
        %p374 = pneg %p56
        %p375 = pneg %p53
        %p376 = pneg %p82
        %p377 = pneg %p79
        %p378 = pneg %p103
        %p379 = pneg %p100
        %p380 = pneg %p124
        %p381 = pneg %p121
        %s382 = sand.u32 %s23, 1
        %s383 = scalar_lea.sflag [#allocation4], %s382
        %s384 = sand.u32 %s139, 1
        %s385 = smul.addr %s384, 2048
        %s386 = scalar_lea.vmem [#allocation11], %s385
        %p387 = pneg %p152
        %p388 = pneg %p149
        %s389 = sand.u32 %s23, 1
        %s390 = scalar_lea.sflag [#allocation4], %s389
        %s391 = sand.u32 %s165, 1
        %s392 = smul.addr %s391, 4
        %s393 = scalar_lea.vmem [#allocation12], %s392
        %p394 = pneg %p178
        %p395 = pneg %p175
        %p396 = pneg %p204
        %p397 = pneg %p201
        %s398 = sand.u32 %s191, 1
        %s399 = scalar_lea.sflag [#allocation5], %s398
        %s400 = sand.u32 %s191, 1
        %s401 = smul.addr %s400, 8
        %s402 = scalar_lea.vmem [#allocation13], %s401
        %s403 = smul.u32 2, %s28
        %s404 = smul.u32 2, %s28
        %s405 = smul.u32 128, %s28
        %s406 = smul.u32 4, %s27
        %s407 = smul.u32 4, %s27
        %s408 = smul.u32 4, %s27
        %p409 = scmp.eq.s32.totalorder %s28, 0
        // Predicated region
        $region69: #{tpu_custom_call.1} parent=43 // pred_check
          %p410 = pneg %p409
        $region70: #{tpu_custom_call.1} parent=43 // pred_check_branch
          %412 = sbr.rel (%p410) target = $region72
        $region71: #{tpu_custom_call.1} parent=43 // pred_region
          %v413 = vld [vmem:[%s368] sm:$0xf]
          %v415 = vperm.slane %v413, 0
          %v416 = vperm.slane %v413, 1
          %v417 = vperm.slane %v413, 2
          %v418 = vperm.slane %v413, 3
          %v419 = vrot.slane %v416, 6
          %v420 = vrot.slane %v417, 4
          %v421 = vrot.slane %v418, 2
          %vm422 = vcmask 1041408
          %v423 = vsel %vm422, %v415, %v419
          %vm424 = vcmask 1045508
          %v425 = vsel %vm424, %v420, %v421
          %vm426 = vcmask 1043456
          %v427 = vsel %vm426, %v423, %v425
          %429 = vst [vmem:[%s402] sm:$0xff] %v427
        $region72: #{tpu_custom_call.1} parent=43 // pred_fallthru
          _
        %v430 = vld [vmem:[#allocation3] sm:$0xff]
        %v431 = vld [vmem:[#allocation3 + $0x8] sm:$0xff]
        %v432 = vld [vmem:[#allocation6] sm:$0xff]
        %v433 = vld [vmem:[#allocation6 + $0x8] sm:$0xff]
        %v434 = vsub.f32 %v430, %v432
        %v435 = vsub.f32 %v431, %v433
        %v436 = vmax.f32 %v434, 0.0
        %v437 = vmax.f32 %v435, 0.0
        %v438 = vld [vmem:[#allocation8] sm:$0xff]
        %v439 = vld [vmem:[#allocation8 + $0x8] sm:$0xff]
        %v440 = vld [vmem:[#allocation8 + $0x10] sm:$0xff]
        %v441 = vld [vmem:[#allocation8 + $0x18] sm:$0xff]
        %v442 = vld [vmem:[#allocation8 + $0x20] sm:$0xff]
        %v443 = vld [vmem:[#allocation8 + $0x28] sm:$0xff]
        %v444 = vld [vmem:[#allocation8 + $0x30] sm:$0xff]
        %v445 = vld [vmem:[#allocation8 + $0x38] sm:$0xff]
        %v446 = vld [vmem:[#allocation8 + $0x40] sm:$0xff]
        %v447 = vld [vmem:[#allocation8 + $0x48] sm:$0xff]
        %v448 = vld [vmem:[#allocation8 + $0x50] sm:$0xff]
        %v449 = vld [vmem:[#allocation8 + $0x58] sm:$0xff]
        %v450 = vld [vmem:[#allocation8 + $0x60] sm:$0xff]
        %v451 = vld [vmem:[#allocation8 + $0x68] sm:$0xff]
        %v452 = vld [vmem:[#allocation8 + $0x70] sm:$0xff]
        %v453 = vld [vmem:[#allocation8 + $0x78] sm:$0xff]
        %v454 = vld [vmem:[#allocation9] sm:$0x1]
        %v456 = vperm.slane %v454, 0
        %458 = vmatpush.msra.mxu0 %v453
        %459 = vmatpush.msra.mxu0 %v452
        %460 = vmatpush.msra.mxu0 %v451
        %461 = vmatpush.msra.mxu0 %v450
        %462 = vmatpush.msra.mxu0 %v449
        %463 = vmatpush.msra.mxu0 %v448
        %464 = vmatpush.msra.mxu0 %v447
        %465 = vmatpush.msra.mxu0 %v446
        %466 = vmatpush.msra.mxu0 %v445
        %467 = vmatpush.msra.mxu0 %v444
        %468 = vmatpush.msra.mxu0 %v443
        %469 = vmatpush.msra.mxu0 %v442
        %470 = vmatpush.msra.mxu0 %v441
        %471 = vmatpush.msra.mxu0 %v440
        %472 = vmatpush.msra.mxu0 %v439
        %473 = vmatpush.msra.mxu0 %v438
        %474 = vmatmul.f32.gmra.mxu0 %v436
        %v475 = vpop.f32.mrf.mxu0
        %v476 = vadd.f32 %v456, %v475
        %477 = vmatmul.f32.gmra.mxu0 %v437
        %v478 = vpop.f32.mrf.mxu0
        %v479 = vadd.f32 %v456, %v478
        %480 = vdwg.mxu0
        %v481 = vmax.f32 %v476, 0.0
        %v482 = vmax.f32 %v479, 0.0
        %v483 = vpack.c.bf16 %v481, %v481
        %v484 = vpack.c.bf16 %v482, %v482
        %485 = vst [vmem:[#allocation2] sm:$0x1] %v483
        %487 = vst [vmem:[#allocation1] sm:$0xff] %v483
        %s488 = scalar_lea.vmem [#allocation1], 1
        %v489 = vld [vmem:[%s488] ss:$4 sm:$0xff]
        %491 = vst [vmem:[#allocation2 + $0x1] sm:$0x1] %v489
        %492 = vst [vmem:[#allocation1] sm:$0xff] %v483
        %s493 = scalar_lea.vmem [#allocation1], 2
        %v494 = vld [vmem:[%s493] ss:$4 sm:$0xff]
        %496 = vst [vmem:[#allocation2 + $0x2] sm:$0x1] %v494
        %497 = vst [vmem:[#allocation1] sm:$0xff] %v483
        %s498 = scalar_lea.vmem [#allocation1], 3
        %v499 = vld [vmem:[%s498] ss:$4 sm:$0xff]
        %501 = vst [vmem:[#allocation2 + $0x3] sm:$0x1] %v499
        %502 = vst [vmem:[#allocation2 + $0x4] sm:$0x1] %v484
        %504 = vst [vmem:[#allocation1] sm:$0xff] %v484
        %s505 = scalar_lea.vmem [#allocation1], 1
        %v506 = vld [vmem:[%s505] ss:$4 sm:$0xff]
        %508 = vst [vmem:[#allocation2 + $0x5] sm:$0x1] %v506
        %509 = vst [vmem:[#allocation1] sm:$0xff] %v484
        %s510 = scalar_lea.vmem [#allocation1], 2
        %v511 = vld [vmem:[%s510] ss:$4 sm:$0xff]
        %513 = vst [vmem:[#allocation2 + $0x6] sm:$0x1] %v511
        %514 = vst [vmem:[#allocation1] sm:$0xff] %v484
        %s515 = scalar_lea.vmem [#allocation1], 3
        %v516 = vld [vmem:[%s515] ss:$4 sm:$0xff]
        %518 = vst [vmem:[#allocation2 + $0x7] sm:$0x1] %v516
        %v519 = vld [vmem:[%s402] sm:$0xff]
        %v520 = vld [vmem:[#allocation2] sm:$0xff]
        %v521 = vld [vmem:[%s358] sm:$0xff]
        %v522 = vld [vmem:[%s358 + $0x8] sm:$0xff]
        %v523 = vld [vmem:[%s358 + $0x10] sm:$0xff]
        %v524 = vld [vmem:[%s358 + $0x18] sm:$0xff]
        %v525 = vld [vmem:[%s358 + $0x20] sm:$0xff]
        %v526 = vld [vmem:[%s358 + $0x28] sm:$0xff]
        %v527 = vld [vmem:[%s358 + $0x30] sm:$0xff]
        %v528 = vld [vmem:[%s358 + $0x38] sm:$0xff]
        %v529 = vld [vmem:[%s358 + $0x40] sm:$0xff]
        %v530 = vld [vmem:[%s358 + $0x48] sm:$0xff]
        %v531 = vld [vmem:[%s358 + $0x50] sm:$0xff]
        %v532 = vld [vmem:[%s358 + $0x58] sm:$0xff]
        %v533 = vld [vmem:[%s358 + $0x60] sm:$0xff]
        %v534 = vld [vmem:[%s358 + $0x68] sm:$0xff]
        %v535 = vld [vmem:[%s358 + $0x70] sm:$0xff]
        %v536 = vld [vmem:[%s358 + $0x78] sm:$0xff]
        %v537 = vld [vmem:[%s358 + $0x80] sm:$0xff]
        %v538 = vld [vmem:[%s358 + $0x88] sm:$0xff]
        %v539 = vld [vmem:[%s358 + $0x90] sm:$0xff]
        %v540 = vld [vmem:[%s358 + $0x98] sm:$0xff]
        %v541 = vld [vmem:[%s358 + $0xa0] sm:$0xff]
        %v542 = vld [vmem:[%s358 + $0xa8] sm:$0xff]
        %v543 = vld [vmem:[%s358 + $0xb0] sm:$0xff]
        %v544 = vld [vmem:[%s358 + $0xb8] sm:$0xff]
        %v545 = vld [vmem:[%s358 + $0xc0] sm:$0xff]
        %v546 = vld [vmem:[%s358 + $0xc8] sm:$0xff]
        %v547 = vld [vmem:[%s358 + $0xd0] sm:$0xff]
        %v548 = vld [vmem:[%s358 + $0xd8] sm:$0xff]
        %v549 = vld [vmem:[%s358 + $0xe0] sm:$0xff]
        %v550 = vld [vmem:[%s358 + $0xe8] sm:$0xff]
        %v551 = vld [vmem:[%s358 + $0xf0] sm:$0xff]
        %v552 = vld [vmem:[%s358 + $0xf8] sm:$0xff]
        %v553 = vld [vmem:[%s358 + $0x100] sm:$0xff]
        %v554 = vld [vmem:[%s358 + $0x108] sm:$0xff]
        %v555 = vld [vmem:[%s358 + $0x110] sm:$0xff]
        %v556 = vld [vmem:[%s358 + $0x118] sm:$0xff]
        %v557 = vld [vmem:[%s358 + $0x120] sm:$0xff]
        %v558 = vld [vmem:[%s358 + $0x128] sm:$0xff]
        %v559 = vld [vmem:[%s358 + $0x130] sm:$0xff]
        %v560 = vld [vmem:[%s358 + $0x138] sm:$0xff]
        %v561 = vld [vmem:[%s358 + $0x140] sm:$0xff]
        %v562 = vld [vmem:[%s358 + $0x148] sm:$0xff]
        %v563 = vld [vmem:[%s358 + $0x150] sm:$0xff]
        %v564 = vld [vmem:[%s358 + $0x158] sm:$0xff]
        %v565 = vld [vmem:[%s358 + $0x160] sm:$0xff]
        %v566 = vld [vmem:[%s358 + $0x168] sm:$0xff]
        %v567 = vld [vmem:[%s358 + $0x170] sm:$0xff]
        %v568 = vld [vmem:[%s358 + $0x178] sm:$0xff]
        %v569 = vld [vmem:[%s358 + $0x180] sm:$0xff]
        %v570 = vld [vmem:[%s358 + $0x188] sm:$0xff]
        %v571 = vld [vmem:[%s358 + $0x190] sm:$0xff]
        %v572 = vld [vmem:[%s358 + $0x198] sm:$0xff]
        %v573 = vld [vmem:[%s358 + $0x1a0] sm:$0xff]
        %v574 = vld [vmem:[%s358 + $0x1a8] sm:$0xff]
        %v575 = vld [vmem:[%s358 + $0x1b0] sm:$0xff]
        %v576 = vld [vmem:[%s358 + $0x1b8] sm:$0xff]
        %v577 = vld [vmem:[%s358 + $0x1c0] sm:$0xff]
        %v578 = vld [vmem:[%s358 + $0x1c8] sm:$0xff]
        %v579 = vld [vmem:[%s358 + $0x1d0] sm:$0xff]
        %v580 = vld [vmem:[%s358 + $0x1d8] sm:$0xff]
        %v581 = vld [vmem:[%s358 + $0x1e0] sm:$0xff]
        %v582 = vld [vmem:[%s358 + $0x1e8] sm:$0xff]
        %v583 = vld [vmem:[%s358 + $0x1f0] sm:$0xff]
        %v584 = vld [vmem:[%s358 + $0x1f8] sm:$0xff]
        %v585 = vld [vmem:[%s358 + $0x200] sm:$0xff]
        %v586 = vld [vmem:[%s358 + $0x208] sm:$0xff]
        %v587 = vld [vmem:[%s358 + $0x210] sm:$0xff]
        %v588 = vld [vmem:[%s358 + $0x218] sm:$0xff]
        %v589 = vld [vmem:[%s358 + $0x220] sm:$0xff]
        %v590 = vld [vmem:[%s358 + $0x228] sm:$0xff]
        %v591 = vld [vmem:[%s358 + $0x230] sm:$0xff]
        %v592 = vld [vmem:[%s358 + $0x238] sm:$0xff]
        %v593 = vld [vmem:[%s358 + $0x240] sm:$0xff]
        %v594 = vld [vmem:[%s358 + $0x248] sm:$0xff]
        %v595 = vld [vmem:[%s358 + $0x250] sm:$0xff]
        %v596 = vld [vmem:[%s358 + $0x258] sm:$0xff]
        %v597 = vld [vmem:[%s358 + $0x260] sm:$0xff]
        %v598 = vld [vmem:[%s358 + $0x268] sm:$0xff]
        %v599 = vld [vmem:[%s358 + $0x270] sm:$0xff]
        %v600 = vld [vmem:[%s358 + $0x278] sm:$0xff]
        %v601 = vld [vmem:[%s358 + $0x280] sm:$0xff]
        %v602 = vld [vmem:[%s358 + $0x288] sm:$0xff]
        %v603 = vld [vmem:[%s358 + $0x290] sm:$0xff]
        %v604 = vld [vmem:[%s358 + $0x298] sm:$0xff]
        %v605 = vld [vmem:[%s358 + $0x2a0] sm:$0xff]
        %v606 = vld [vmem:[%s358 + $0x2a8] sm:$0xff]
        %v607 = vld [vmem:[%s358 + $0x2b0] sm:$0xff]
        %v608 = vld [vmem:[%s358 + $0x2b8] sm:$0xff]
        %v609 = vld [vmem:[%s358 + $0x2c0] sm:$0xff]
        %v610 = vld [vmem:[%s358 + $0x2c8] sm:$0xff]
        %v611 = vld [vmem:[%s358 + $0x2d0] sm:$0xff]
        %v612 = vld [vmem:[%s358 + $0x2d8] sm:$0xff]
        %v613 = vld [vmem:[%s358 + $0x2e0] sm:$0xff]
        %v614 = vld [vmem:[%s358 + $0x2e8] sm:$0xff]
        %v615 = vld [vmem:[%s358 + $0x2f0] sm:$0xff]
        %v616 = vld [vmem:[%s358 + $0x2f8] sm:$0xff]
        %v617 = vld [vmem:[%s358 + $0x300] sm:$0xff]
        %v618 = vld [vmem:[%s358 + $0x308] sm:$0xff]
        %v619 = vld [vmem:[%s358 + $0x310] sm:$0xff]
        %v620 = vld [vmem:[%s358 + $0x318] sm:$0xff]
        %v621 = vld [vmem:[%s358 + $0x320] sm:$0xff]
        %v622 = vld [vmem:[%s358 + $0x328] sm:$0xff]
        %v623 = vld [vmem:[%s358 + $0x330] sm:$0xff]
        %v624 = vld [vmem:[%s358 + $0x338] sm:$0xff]
        %v625 = vld [vmem:[%s358 + $0x340] sm:$0xff]
        %v626 = vld [vmem:[%s358 + $0x348] sm:$0xff]
        %v627 = vld [vmem:[%s358 + $0x350] sm:$0xff]
        %v628 = vld [vmem:[%s358 + $0x358] sm:$0xff]
        %v629 = vld [vmem:[%s358 + $0x360] sm:$0xff]
        %v630 = vld [vmem:[%s358 + $0x368] sm:$0xff]
        %v631 = vld [vmem:[%s358 + $0x370] sm:$0xff]
        %v632 = vld [vmem:[%s358 + $0x378] sm:$0xff]
        %v633 = vld [vmem:[%s358 + $0x380] sm:$0xff]
        %v634 = vld [vmem:[%s358 + $0x388] sm:$0xff]
        %v635 = vld [vmem:[%s358 + $0x390] sm:$0xff]
        %v636 = vld [vmem:[%s358 + $0x398] sm:$0xff]
        %v637 = vld [vmem:[%s358 + $0x3a0] sm:$0xff]
        %v638 = vld [vmem:[%s358 + $0x3a8] sm:$0xff]
        %v639 = vld [vmem:[%s358 + $0x3b0] sm:$0xff]
        %v640 = vld [vmem:[%s358 + $0x3b8] sm:$0xff]
        %v641 = vld [vmem:[%s358 + $0x3c0] sm:$0xff]
        %v642 = vld [vmem:[%s358 + $0x3c8] sm:$0xff]
        %v643 = vld [vmem:[%s358 + $0x3d0] sm:$0xff]
        %v644 = vld [vmem:[%s358 + $0x3d8] sm:$0xff]
        %v645 = vld [vmem:[%s358 + $0x3e0] sm:$0xff]
        %v646 = vld [vmem:[%s358 + $0x3e8] sm:$0xff]
        %v647 = vld [vmem:[%s358 + $0x3f0] sm:$0xff]
        %v648 = vld [vmem:[%s358 + $0x3f8] sm:$0xff]
        %v649 = vld [vmem:[%s358 + $0x400] sm:$0xff]
        %v650 = vld [vmem:[%s358 + $0x408] sm:$0xff]
        %v651 = vld [vmem:[%s358 + $0x410] sm:$0xff]
        %v652 = vld [vmem:[%s358 + $0x418] sm:$0xff]
        %v653 = vld [vmem:[%s358 + $0x420] sm:$0xff]
        %v654 = vld [vmem:[%s358 + $0x428] sm:$0xff]
        %v655 = vld [vmem:[%s358 + $0x430] sm:$0xff]
        %v656 = vld [vmem:[%s358 + $0x438] sm:$0xff]
        %v657 = vld [vmem:[%s358 + $0x440] sm:$0xff]
        %v658 = vld [vmem:[%s358 + $0x448] sm:$0xff]
        %v659 = vld [vmem:[%s358 + $0x450] sm:$0xff]
        %v660 = vld [vmem:[%s358 + $0x458] sm:$0xff]
        %v661 = vld [vmem:[%s358 + $0x460] sm:$0xff]
        %v662 = vld [vmem:[%s358 + $0x468] sm:$0xff]
        %v663 = vld [vmem:[%s358 + $0x470] sm:$0xff]
        %v664 = vld [vmem:[%s358 + $0x478] sm:$0xff]
        %v665 = vld [vmem:[%s358 + $0x480] sm:$0xff]
        %v666 = vld [vmem:[%s358 + $0x488] sm:$0xff]
        %v667 = vld [vmem:[%s358 + $0x490] sm:$0xff]
        %v668 = vld [vmem:[%s358 + $0x498] sm:$0xff]
        %v669 = vld [vmem:[%s358 + $0x4a0] sm:$0xff]
        %v670 = vld [vmem:[%s358 + $0x4a8] sm:$0xff]
        %v671 = vld [vmem:[%s358 + $0x4b0] sm:$0xff]
        %v672 = vld [vmem:[%s358 + $0x4b8] sm:$0xff]
        %v673 = vld [vmem:[%s358 + $0x4c0] sm:$0xff]
        %v674 = vld [vmem:[%s358 + $0x4c8] sm:$0xff]
        %v675 = vld [vmem:[%s358 + $0x4d0] sm:$0xff]
        %v676 = vld [vmem:[%s358 + $0x4d8] sm:$0xff]
        %v677 = vld [vmem:[%s358 + $0x4e0] sm:$0xff]
        %v678 = vld [vmem:[%s358 + $0x4e8] sm:$0xff]
        %v679 = vld [vmem:[%s358 + $0x4f0] sm:$0xff]
        %v680 = vld [vmem:[%s358 + $0x4f8] sm:$0xff]
        %v681 = vld [vmem:[%s358 + $0x500] sm:$0xff]
        %v682 = vld [vmem:[%s358 + $0x508] sm:$0xff]
        %v683 = vld [vmem:[%s358 + $0x510] sm:$0xff]
        %v684 = vld [vmem:[%s358 + $0x518] sm:$0xff]
        %v685 = vld [vmem:[%s358 + $0x520] sm:$0xff]
        %v686 = vld [vmem:[%s358 + $0x528] sm:$0xff]
        %v687 = vld [vmem:[%s358 + $0x530] sm:$0xff]
        %v688 = vld [vmem:[%s358 + $0x538] sm:$0xff]
        %v689 = vld [vmem:[%s358 + $0x540] sm:$0xff]
        %v690 = vld [vmem:[%s358 + $0x548] sm:$0xff]
        %v691 = vld [vmem:[%s358 + $0x550] sm:$0xff]
        %v692 = vld [vmem:[%s358 + $0x558] sm:$0xff]
        %v693 = vld [vmem:[%s358 + $0x560] sm:$0xff]
        %v694 = vld [vmem:[%s358 + $0x568] sm:$0xff]
        %v695 = vld [vmem:[%s358 + $0x570] sm:$0xff]
        %v696 = vld [vmem:[%s358 + $0x578] sm:$0xff]
        %v697 = vld [vmem:[%s358 + $0x580] sm:$0xff]
        %v698 = vld [vmem:[%s358 + $0x588] sm:$0xff]
        %v699 = vld [vmem:[%s358 + $0x590] sm:$0xff]
        %v700 = vld [vmem:[%s358 + $0x598] sm:$0xff]
        %v701 = vld [vmem:[%s358 + $0x5a0] sm:$0xff]
        %v702 = vld [vmem:[%s358 + $0x5a8] sm:$0xff]
        %v703 = vld [vmem:[%s358 + $0x5b0] sm:$0xff]
        %v704 = vld [vmem:[%s358 + $0x5b8] sm:$0xff]
        %v705 = vld [vmem:[%s358 + $0x5c0] sm:$0xff]
        %v706 = vld [vmem:[%s358 + $0x5c8] sm:$0xff]
        %v707 = vld [vmem:[%s358 + $0x5d0] sm:$0xff]
        %v708 = vld [vmem:[%s358 + $0x5d8] sm:$0xff]
        %v709 = vld [vmem:[%s358 + $0x5e0] sm:$0xff]
        %v710 = vld [vmem:[%s358 + $0x5e8] sm:$0xff]
        %v711 = vld [vmem:[%s358 + $0x5f0] sm:$0xff]
        %v712 = vld [vmem:[%s358 + $0x5f8] sm:$0xff]
        %v713 = vld [vmem:[%s358 + $0x600] sm:$0xff]
        %v714 = vld [vmem:[%s358 + $0x608] sm:$0xff]
        %v715 = vld [vmem:[%s358 + $0x610] sm:$0xff]
        %v716 = vld [vmem:[%s358 + $0x618] sm:$0xff]
        %v717 = vld [vmem:[%s358 + $0x620] sm:$0xff]
        %v718 = vld [vmem:[%s358 + $0x628] sm:$0xff]
        %v719 = vld [vmem:[%s358 + $0x630] sm:$0xff]
        %v720 = vld [vmem:[%s358 + $0x638] sm:$0xff]
        %v721 = vld [vmem:[%s358 + $0x640] sm:$0xff]
        %v722 = vld [vmem:[%s358 + $0x648] sm:$0xff]
        %v723 = vld [vmem:[%s358 + $0x650] sm:$0xff]
        %v724 = vld [vmem:[%s358 + $0x658] sm:$0xff]
        %v725 = vld [vmem:[%s358 + $0x660] sm:$0xff]
        %v726 = vld [vmem:[%s358 + $0x668] sm:$0xff]
        %v727 = vld [vmem:[%s358 + $0x670] sm:$0xff]
        %v728 = vld [vmem:[%s358 + $0x678] sm:$0xff]
        %v729 = vld [vmem:[%s358 + $0x680] sm:$0xff]
        %v730 = vld [vmem:[%s358 + $0x688] sm:$0xff]
        %v731 = vld [vmem:[%s358 + $0x690] sm:$0xff]
        %v732 = vld [vmem:[%s358 + $0x698] sm:$0xff]
        %v733 = vld [vmem:[%s358 + $0x6a0] sm:$0xff]
        %v734 = vld [vmem:[%s358 + $0x6a8] sm:$0xff]
        %v735 = vld [vmem:[%s358 + $0x6b0] sm:$0xff]
        %v736 = vld [vmem:[%s358 + $0x6b8] sm:$0xff]
        %v737 = vld [vmem:[%s358 + $0x6c0] sm:$0xff]
        %v738 = vld [vmem:[%s358 + $0x6c8] sm:$0xff]
        %v739 = vld [vmem:[%s358 + $0x6d0] sm:$0xff]
        %v740 = vld [vmem:[%s358 + $0x6d8] sm:$0xff]
        %v741 = vld [vmem:[%s358 + $0x6e0] sm:$0xff]
        %v742 = vld [vmem:[%s358 + $0x6e8] sm:$0xff]
        %v743 = vld [vmem:[%s358 + $0x6f0] sm:$0xff]
        %v744 = vld [vmem:[%s358 + $0x6f8] sm:$0xff]
        %v745 = vld [vmem:[%s358 + $0x700] sm:$0xff]
        %v746 = vld [vmem:[%s358 + $0x708] sm:$0xff]
        %v747 = vld [vmem:[%s358 + $0x710] sm:$0xff]
        %v748 = vld [vmem:[%s358 + $0x718] sm:$0xff]
        %v749 = vld [vmem:[%s358 + $0x720] sm:$0xff]
        %v750 = vld [vmem:[%s358 + $0x728] sm:$0xff]
        %v751 = vld [vmem:[%s358 + $0x730] sm:$0xff]
        %v752 = vld [vmem:[%s358 + $0x738] sm:$0xff]
        %v753 = vld [vmem:[%s358 + $0x740] sm:$0xff]
        %v754 = vld [vmem:[%s358 + $0x748] sm:$0xff]
        %v755 = vld [vmem:[%s358 + $0x750] sm:$0xff]
        %v756 = vld [vmem:[%s358 + $0x758] sm:$0xff]
        %v757 = vld [vmem:[%s358 + $0x760] sm:$0xff]
        %v758 = vld [vmem:[%s358 + $0x768] sm:$0xff]
        %v759 = vld [vmem:[%s358 + $0x770] sm:$0xff]
        %v760 = vld [vmem:[%s358 + $0x778] sm:$0xff]
        %v761 = vld [vmem:[%s358 + $0x780] sm:$0xff]
        %v762 = vld [vmem:[%s358 + $0x788] sm:$0xff]
        %v763 = vld [vmem:[%s358 + $0x790] sm:$0xff]
        %v764 = vld [vmem:[%s358 + $0x798] sm:$0xff]
        %v765 = vld [vmem:[%s358 + $0x7a0] sm:$0xff]
        %v766 = vld [vmem:[%s358 + $0x7a8] sm:$0xff]
        %v767 = vld [vmem:[%s358 + $0x7b0] sm:$0xff]
        %v768 = vld [vmem:[%s358 + $0x7b8] sm:$0xff]
        %v769 = vld [vmem:[%s358 + $0x7c0] sm:$0xff]
        %v770 = vld [vmem:[%s358 + $0x7c8] sm:$0xff]
        %v771 = vld [vmem:[%s358 + $0x7d0] sm:$0xff]
        %v772 = vld [vmem:[%s358 + $0x7d8] sm:$0xff]
        %v773 = vld [vmem:[%s358 + $0x7e0] sm:$0xff]
        %v774 = vld [vmem:[%s358 + $0x7e8] sm:$0xff]
        %v775 = vld [vmem:[%s358 + $0x7f0] sm:$0xff]
        %v776 = vld [vmem:[%s358 + $0x7f8] sm:$0xff]
        %778 = vst [vmem:[#allocation1] ss:$9 sm:$0xff] %v520
        %v779 = vld [vmem:[#allocation1] sm:$0xff]
        %v780 = vld [vmem:[#allocation1 + $0x9] sm:$0xff]
        %v781 = vld [vmem:[#allocation1 + $0x12] sm:$0xff]
        %v782 = vld [vmem:[#allocation1 + $0x1b] sm:$0xff]
        %v783 = vld [vmem:[#allocation1 + $0x24] sm:$0xff]
        %v784 = vld [vmem:[#allocation1 + $0x2d] sm:$0xff]
        %v785 = vld [vmem:[#allocation1 + $0x36] sm:$0xff]
        %v786 = vld [vmem:[#allocation1 + $0x3f] sm:$0xff]
        %v1051 = vunpack.c.l.b16 %v521
        %v1052 = vunpack.c.h.b16 %v521
        %v1053 = vunpack.c.l.b16 %v522
        %v1054 = vunpack.c.h.b16 %v522
        %v1055 = vunpack.c.l.b16 %v523
        %v1056 = vunpack.c.h.b16 %v523
        %v1057 = vunpack.c.l.b16 %v524
        %v1058 = vunpack.c.h.b16 %v524
        %v1059 = vunpack.c.l.b16 %v525
        %v1060 = vunpack.c.h.b16 %v525
        %v1061 = vunpack.c.l.b16 %v526
        %v1062 = vunpack.c.h.b16 %v526
        %v1063 = vunpack.c.l.b16 %v527
        %v1064 = vunpack.c.h.b16 %v527
        %v1065 = vunpack.c.l.b16 %v528
        %v1066 = vunpack.c.h.b16 %v528
        %v1067 = vunpack.c.l.b16 %v529
        %v1068 = vunpack.c.h.b16 %v529
        %v1069 = vunpack.c.l.b16 %v530
        %v1070 = vunpack.c.h.b16 %v530
        %v1071 = vunpack.c.l.b16 %v531
        %v1072 = vunpack.c.h.b16 %v531
        %v1073 = vunpack.c.l.b16 %v532
        %v1074 = vunpack.c.h.b16 %v532
        %v1075 = vunpack.c.l.b16 %v533
        %v1076 = vunpack.c.h.b16 %v533
        %v1077 = vunpack.c.l.b16 %v534
        %v1078 = vunpack.c.h.b16 %v534
        %v1079 = vunpack.c.l.b16 %v535
        %v1080 = vunpack.c.h.b16 %v535
        %v1081 = vunpack.c.l.b16 %v536
        %v1082 = vunpack.c.h.b16 %v536
        %v1083 = vunpack.c.l.b16 %v537
        %v1084 = vunpack.c.h.b16 %v537
        %v1085 = vunpack.c.l.b16 %v538
        %v1086 = vunpack.c.h.b16 %v538
        %v1087 = vunpack.c.l.b16 %v539
        %v1088 = vunpack.c.h.b16 %v539
        %v1089 = vunpack.c.l.b16 %v540
        %v1090 = vunpack.c.h.b16 %v540
        %v1091 = vunpack.c.l.b16 %v541
        %v1092 = vunpack.c.h.b16 %v541
        %v1093 = vunpack.c.l.b16 %v542
        %v1094 = vunpack.c.h.b16 %v542
        %v1095 = vunpack.c.l.b16 %v543
        %v1096 = vunpack.c.h.b16 %v543
        %v1097 = vunpack.c.l.b16 %v544
        %v1098 = vunpack.c.h.b16 %v544
        %v1099 = vunpack.c.l.b16 %v545
        %v1100 = vunpack.c.h.b16 %v545
        %v1101 = vunpack.c.l.b16 %v546
        %v1102 = vunpack.c.h.b16 %v546
        %v1103 = vunpack.c.l.b16 %v547
        %v1104 = vunpack.c.h.b16 %v547
        %v1105 = vunpack.c.l.b16 %v548
        %v1106 = vunpack.c.h.b16 %v548
        %v1107 = vunpack.c.l.b16 %v549
        %v1108 = vunpack.c.h.b16 %v549
        %v1109 = vunpack.c.l.b16 %v550
        %v1110 = vunpack.c.h.b16 %v550
        %v1111 = vunpack.c.l.b16 %v551
        %v1112 = vunpack.c.h.b16 %v551
        %v1113 = vunpack.c.l.b16 %v552
        %v1114 = vunpack.c.h.b16 %v552
        %v1115 = vunpack.c.l.b16 %v553
        %v1116 = vunpack.c.h.b16 %v553
        %v1117 = vunpack.c.l.b16 %v554
        %v1118 = vunpack.c.h.b16 %v554
        %v1119 = vunpack.c.l.b16 %v555
        %v1120 = vunpack.c.h.b16 %v555
        %v1121 = vunpack.c.l.b16 %v556
        %v1122 = vunpack.c.h.b16 %v556
        %v1123 = vunpack.c.l.b16 %v557
        %v1124 = vunpack.c.h.b16 %v557
        %v1125 = vunpack.c.l.b16 %v558
        %v1126 = vunpack.c.h.b16 %v558
        %v1127 = vunpack.c.l.b16 %v559
        %v1128 = vunpack.c.h.b16 %v559
        %v1129 = vunpack.c.l.b16 %v560
        %v1130 = vunpack.c.h.b16 %v560
        %v1131 = vunpack.c.l.b16 %v561
        %v1132 = vunpack.c.h.b16 %v561
        %v1133 = vunpack.c.l.b16 %v562
        %v1134 = vunpack.c.h.b16 %v562
        %v1135 = vunpack.c.l.b16 %v563
        %v1136 = vunpack.c.h.b16 %v563
        %v1137 = vunpack.c.l.b16 %v564
        %v1138 = vunpack.c.h.b16 %v564
        %v1139 = vunpack.c.l.b16 %v565
        %v1140 = vunpack.c.h.b16 %v565
        %v1141 = vunpack.c.l.b16 %v566
        %v1142 = vunpack.c.h.b16 %v566
        %v1143 = vunpack.c.l.b16 %v567
        %v1144 = vunpack.c.h.b16 %v567
        %v1145 = vunpack.c.l.b16 %v568
        %v1146 = vunpack.c.h.b16 %v568
        %v1147 = vunpack.c.l.b16 %v569
        %v1148 = vunpack.c.h.b16 %v569
        %v1149 = vunpack.c.l.b16 %v570
        %v1150 = vunpack.c.h.b16 %v570
        %v1151 = vunpack.c.l.b16 %v571
        %v1152 = vunpack.c.h.b16 %v571
        %v1153 = vunpack.c.l.b16 %v572
        %v1154 = vunpack.c.h.b16 %v572
        %v1155 = vunpack.c.l.b16 %v573
        %v1156 = vunpack.c.h.b16 %v573
        %v1157 = vunpack.c.l.b16 %v574
        %v1158 = vunpack.c.h.b16 %v574
        %v1159 = vunpack.c.l.b16 %v575
        %v1160 = vunpack.c.h.b16 %v575
        %v1161 = vunpack.c.l.b16 %v576
        %v1162 = vunpack.c.h.b16 %v576
        %v1163 = vunpack.c.l.b16 %v577
        %v1164 = vunpack.c.h.b16 %v577
        %v1165 = vunpack.c.l.b16 %v578
        %v1166 = vunpack.c.h.b16 %v578
        %v1167 = vunpack.c.l.b16 %v579
        %v1168 = vunpack.c.h.b16 %v579
        %v1169 = vunpack.c.l.b16 %v580
        %v1170 = vunpack.c.h.b16 %v580
        %v1171 = vunpack.c.l.b16 %v581
        %v1172 = vunpack.c.h.b16 %v581
        %v1173 = vunpack.c.l.b16 %v582
        %v1174 = vunpack.c.h.b16 %v582
        %v1175 = vunpack.c.l.b16 %v583
        %v1176 = vunpack.c.h.b16 %v583
        %v1177 = vunpack.c.l.b16 %v584
        %v1178 = vunpack.c.h.b16 %v584
        %v1179 = vunpack.c.l.b16 %v585
        %v1180 = vunpack.c.h.b16 %v585
        %v1181 = vunpack.c.l.b16 %v586
        %v1182 = vunpack.c.h.b16 %v586
        %v1183 = vunpack.c.l.b16 %v587
        %v1184 = vunpack.c.h.b16 %v587
        %v1185 = vunpack.c.l.b16 %v588
        %v1186 = vunpack.c.h.b16 %v588
        %v1187 = vunpack.c.l.b16 %v589
        %v1188 = vunpack.c.h.b16 %v589
        %v1189 = vunpack.c.l.b16 %v590
        %v1190 = vunpack.c.h.b16 %v590
        %v1191 = vunpack.c.l.b16 %v591
        %v1192 = vunpack.c.h.b16 %v591
        %v1193 = vunpack.c.l.b16 %v592
        %v1194 = vunpack.c.h.b16 %v592
        %v1195 = vunpack.c.l.b16 %v593
        %v1196 = vunpack.c.h.b16 %v593
        %v1197 = vunpack.c.l.b16 %v594
        %v1198 = vunpack.c.h.b16 %v594
        %v1199 = vunpack.c.l.b16 %v595
        %v1200 = vunpack.c.h.b16 %v595
        %v1201 = vunpack.c.l.b16 %v596
        %v1202 = vunpack.c.h.b16 %v596
        %v1203 = vunpack.c.l.b16 %v597
        %v1204 = vunpack.c.h.b16 %v597
        %v1205 = vunpack.c.l.b16 %v598
        %v1206 = vunpack.c.h.b16 %v598
        %v1207 = vunpack.c.l.b16 %v599
        %v1208 = vunpack.c.h.b16 %v599
        %v1209 = vunpack.c.l.b16 %v600
        %v1210 = vunpack.c.h.b16 %v600
        %v1211 = vunpack.c.l.b16 %v601
        %v1212 = vunpack.c.h.b16 %v601
        %v1213 = vunpack.c.l.b16 %v602
        %v1214 = vunpack.c.h.b16 %v602
        %v1215 = vunpack.c.l.b16 %v603
        %v1216 = vunpack.c.h.b16 %v603
        %v1217 = vunpack.c.l.b16 %v604
        %v1218 = vunpack.c.h.b16 %v604
        %v1219 = vunpack.c.l.b16 %v605
        %v1220 = vunpack.c.h.b16 %v605
        %v1221 = vunpack.c.l.b16 %v606
        %v1222 = vunpack.c.h.b16 %v606
        %v1223 = vunpack.c.l.b16 %v607
        %v1224 = vunpack.c.h.b16 %v607
        %v1225 = vunpack.c.l.b16 %v608
        %v1226 = vunpack.c.h.b16 %v608
        %v1227 = vunpack.c.l.b16 %v609
        %v1228 = vunpack.c.h.b16 %v609
        %v1229 = vunpack.c.l.b16 %v610
        %v1230 = vunpack.c.h.b16 %v610
        %v1231 = vunpack.c.l.b16 %v611
        %v1232 = vunpack.c.h.b16 %v611
        %v1233 = vunpack.c.l.b16 %v612
        %v1234 = vunpack.c.h.b16 %v612
        %v1235 = vunpack.c.l.b16 %v613
        %v1236 = vunpack.c.h.b16 %v613
        %v1237 = vunpack.c.l.b16 %v614
        %v1238 = vunpack.c.h.b16 %v614
        %v1239 = vunpack.c.l.b16 %v615
        %v1240 = vunpack.c.h.b16 %v615
        %v1241 = vunpack.c.l.b16 %v616
        %v1242 = vunpack.c.h.b16 %v616
        %v1243 = vunpack.c.l.b16 %v617
        %v1244 = vunpack.c.h.b16 %v617
        %v1245 = vunpack.c.l.b16 %v618
        %v1246 = vunpack.c.h.b16 %v618
        %v1247 = vunpack.c.l.b16 %v619
        %v1248 = vunpack.c.h.b16 %v619
        %v1249 = vunpack.c.l.b16 %v620
        %v1250 = vunpack.c.h.b16 %v620
        %v1251 = vunpack.c.l.b16 %v621
        %v1252 = vunpack.c.h.b16 %v621
        %v1253 = vunpack.c.l.b16 %v622
        %v1254 = vunpack.c.h.b16 %v622
        %v1255 = vunpack.c.l.b16 %v623
        %v1256 = vunpack.c.h.b16 %v623
        %v1257 = vunpack.c.l.b16 %v624
        %v1258 = vunpack.c.h.b16 %v624
        %v1259 = vunpack.c.l.b16 %v625
        %v1260 = vunpack.c.h.b16 %v625
        %v1261 = vunpack.c.l.b16 %v626
        %v1262 = vunpack.c.h.b16 %v626
        %v1263 = vunpack.c.l.b16 %v627
        %v1264 = vunpack.c.h.b16 %v627
        %v1265 = vunpack.c.l.b16 %v628
        %v1266 = vunpack.c.h.b16 %v628
        %v1267 = vunpack.c.l.b16 %v629
        %v1268 = vunpack.c.h.b16 %v629
        %v1269 = vunpack.c.l.b16 %v630
        %v1270 = vunpack.c.h.b16 %v630
        %v1271 = vunpack.c.l.b16 %v631
        %v1272 = vunpack.c.h.b16 %v631
        %v1273 = vunpack.c.l.b16 %v632
        %v1274 = vunpack.c.h.b16 %v632
        %v1275 = vunpack.c.l.b16 %v633
        %v1276 = vunpack.c.h.b16 %v633
        %v1277 = vunpack.c.l.b16 %v634
        %v1278 = vunpack.c.h.b16 %v634
        %v1279 = vunpack.c.l.b16 %v635
        %v1280 = vunpack.c.h.b16 %v635
        %v1281 = vunpack.c.l.b16 %v636
        %v1282 = vunpack.c.h.b16 %v636
        %v1283 = vunpack.c.l.b16 %v637
        %v1284 = vunpack.c.h.b16 %v637
        %v1285 = vunpack.c.l.b16 %v638
        %v1286 = vunpack.c.h.b16 %v638
        %v1287 = vunpack.c.l.b16 %v639
        %v1288 = vunpack.c.h.b16 %v639
        %v1289 = vunpack.c.l.b16 %v640
        %v1290 = vunpack.c.h.b16 %v640
        %v1291 = vunpack.c.l.b16 %v641
        %v1292 = vunpack.c.h.b16 %v641
        %v1293 = vunpack.c.l.b16 %v642
        %v1294 = vunpack.c.h.b16 %v642
        %v1295 = vunpack.c.l.b16 %v643
        %v1296 = vunpack.c.h.b16 %v643
        %v1297 = vunpack.c.l.b16 %v644
        %v1298 = vunpack.c.h.b16 %v644
        %v1299 = vunpack.c.l.b16 %v645
        %v1300 = vunpack.c.h.b16 %v645
        %v1301 = vunpack.c.l.b16 %v646
        %v1302 = vunpack.c.h.b16 %v646
        %v1303 = vunpack.c.l.b16 %v647
        %v1304 = vunpack.c.h.b16 %v647
        %v1305 = vunpack.c.l.b16 %v648
        %v1306 = vunpack.c.h.b16 %v648
        %v1307 = vunpack.c.l.b16 %v649
        %v1308 = vunpack.c.h.b16 %v649
        %v1309 = vunpack.c.l.b16 %v650
        %v1310 = vunpack.c.h.b16 %v650
        %v1311 = vunpack.c.l.b16 %v651
        %v1312 = vunpack.c.h.b16 %v651
        %v1313 = vunpack.c.l.b16 %v652
        %v1314 = vunpack.c.h.b16 %v652
        %v1315 = vunpack.c.l.b16 %v653
        %v1316 = vunpack.c.h.b16 %v653
        %v1317 = vunpack.c.l.b16 %v654
        %v1318 = vunpack.c.h.b16 %v654
        %v1319 = vunpack.c.l.b16 %v655
        %v1320 = vunpack.c.h.b16 %v655
        %v1321 = vunpack.c.l.b16 %v656
        %v1322 = vunpack.c.h.b16 %v656
        %v1323 = vunpack.c.l.b16 %v657
        %v1324 = vunpack.c.h.b16 %v657
        %v1325 = vunpack.c.l.b16 %v658
        %v1326 = vunpack.c.h.b16 %v658
        %v1327 = vunpack.c.l.b16 %v659
        %v1328 = vunpack.c.h.b16 %v659
        %v1329 = vunpack.c.l.b16 %v660
        %v1330 = vunpack.c.h.b16 %v660
        %v1331 = vunpack.c.l.b16 %v661
        %v1332 = vunpack.c.h.b16 %v661
        %v1333 = vunpack.c.l.b16 %v662
        %v1334 = vunpack.c.h.b16 %v662
        %v1335 = vunpack.c.l.b16 %v663
        %v1336 = vunpack.c.h.b16 %v663
        %v1337 = vunpack.c.l.b16 %v664
        %v1338 = vunpack.c.h.b16 %v664
        %v1339 = vunpack.c.l.b16 %v665
        %v1340 = vunpack.c.h.b16 %v665
        %v1341 = vunpack.c.l.b16 %v666
        %v1342 = vunpack.c.h.b16 %v666
        %v1343 = vunpack.c.l.b16 %v667
        %v1344 = vunpack.c.h.b16 %v667
        %v1345 = vunpack.c.l.b16 %v668
        %v1346 = vunpack.c.h.b16 %v668
        %v1347 = vunpack.c.l.b16 %v669
        %v1348 = vunpack.c.h.b16 %v669
        %v1349 = vunpack.c.l.b16 %v670
        %v1350 = vunpack.c.h.b16 %v670
        %v1351 = vunpack.c.l.b16 %v671
        %v1352 = vunpack.c.h.b16 %v671
        %v1353 = vunpack.c.l.b16 %v672
        %v1354 = vunpack.c.h.b16 %v672
        %v1355 = vunpack.c.l.b16 %v673
        %v1356 = vunpack.c.h.b16 %v673
        %v1357 = vunpack.c.l.b16 %v674
        %v1358 = vunpack.c.h.b16 %v674
        %v1359 = vunpack.c.l.b16 %v675
        %v1360 = vunpack.c.h.b16 %v675
        %v1361 = vunpack.c.l.b16 %v676
        %v1362 = vunpack.c.h.b16 %v676
        %v1363 = vunpack.c.l.b16 %v677
        %v1364 = vunpack.c.h.b16 %v677
        %v1365 = vunpack.c.l.b16 %v678
        %v1366 = vunpack.c.h.b16 %v678
        %v1367 = vunpack.c.l.b16 %v679
        %v1368 = vunpack.c.h.b16 %v679
        %v1369 = vunpack.c.l.b16 %v680
        %v1370 = vunpack.c.h.b16 %v680
        %v1371 = vunpack.c.l.b16 %v681
        %v1372 = vunpack.c.h.b16 %v681
        %v1373 = vunpack.c.l.b16 %v682
        %v1374 = vunpack.c.h.b16 %v682
        %v1375 = vunpack.c.l.b16 %v683
        %v1376 = vunpack.c.h.b16 %v683
        %v1377 = vunpack.c.l.b16 %v684
        %v1378 = vunpack.c.h.b16 %v684
        %v1379 = vunpack.c.l.b16 %v685
        %v1380 = vunpack.c.h.b16 %v685
        %v1381 = vunpack.c.l.b16 %v686
        %v1382 = vunpack.c.h.b16 %v686
        %v1383 = vunpack.c.l.b16 %v687
        %v1384 = vunpack.c.h.b16 %v687
        %v1385 = vunpack.c.l.b16 %v688
        %v1386 = vunpack.c.h.b16 %v688
        %v1387 = vunpack.c.l.b16 %v689
        %v1388 = vunpack.c.h.b16 %v689
        %v1389 = vunpack.c.l.b16 %v690
        %v1390 = vunpack.c.h.b16 %v690
        %v1391 = vunpack.c.l.b16 %v691
        %v1392 = vunpack.c.h.b16 %v691
        %v1393 = vunpack.c.l.b16 %v692
        %v1394 = vunpack.c.h.b16 %v692
        %v1395 = vunpack.c.l.b16 %v693
        %v1396 = vunpack.c.h.b16 %v693
        %v1397 = vunpack.c.l.b16 %v694
        %v1398 = vunpack.c.h.b16 %v694
        %v1399 = vunpack.c.l.b16 %v695
        %v1400 = vunpack.c.h.b16 %v695
        %v1401 = vunpack.c.l.b16 %v696
        %v1402 = vunpack.c.h.b16 %v696
        %v1403 = vunpack.c.l.b16 %v697
        %v1404 = vunpack.c.h.b16 %v697
        %v1405 = vunpack.c.l.b16 %v698
        %v1406 = vunpack.c.h.b16 %v698
        %v1407 = vunpack.c.l.b16 %v699
        %v1408 = vunpack.c.h.b16 %v699
        %v1409 = vunpack.c.l.b16 %v700
        %v1410 = vunpack.c.h.b16 %v700
        %v1411 = vunpack.c.l.b16 %v701
        %v1412 = vunpack.c.h.b16 %v701
        %v1413 = vunpack.c.l.b16 %v702
        %v1414 = vunpack.c.h.b16 %v702
        %v1415 = vunpack.c.l.b16 %v703
        %v1416 = vunpack.c.h.b16 %v703
        %v1417 = vunpack.c.l.b16 %v704
        %v1418 = vunpack.c.h.b16 %v704
        %v1419 = vunpack.c.l.b16 %v705
        %v1420 = vunpack.c.h.b16 %v705
        %v1421 = vunpack.c.l.b16 %v706
        %v1422 = vunpack.c.h.b16 %v706
        %v1423 = vunpack.c.l.b16 %v707
        %v1424 = vunpack.c.h.b16 %v707
        %v1425 = vunpack.c.l.b16 %v708
        %v1426 = vunpack.c.h.b16 %v708
        %v1427 = vunpack.c.l.b16 %v709
        %v1428 = vunpack.c.h.b16 %v709
        %v1429 = vunpack.c.l.b16 %v710
        %v1430 = vunpack.c.h.b16 %v710
        %v1431 = vunpack.c.l.b16 %v711
        %v1432 = vunpack.c.h.b16 %v711
        %v1433 = vunpack.c.l.b16 %v712
        %v1434 = vunpack.c.h.b16 %v712
        %v1435 = vunpack.c.l.b16 %v713
        %v1436 = vunpack.c.h.b16 %v713
        %v1437 = vunpack.c.l.b16 %v714
        %v1438 = vunpack.c.h.b16 %v714
        %v1439 = vunpack.c.l.b16 %v715
        %v1440 = vunpack.c.h.b16 %v715
        %v1441 = vunpack.c.l.b16 %v716
        %v1442 = vunpack.c.h.b16 %v716
        %v1443 = vunpack.c.l.b16 %v717
        %v1444 = vunpack.c.h.b16 %v717
        %v1445 = vunpack.c.l.b16 %v718
        %v1446 = vunpack.c.h.b16 %v718
        %v1447 = vunpack.c.l.b16 %v719
        %v1448 = vunpack.c.h.b16 %v719
        %v1449 = vunpack.c.l.b16 %v720
        %v1450 = vunpack.c.h.b16 %v720
        %v1451 = vunpack.c.l.b16 %v721
        %v1452 = vunpack.c.h.b16 %v721
        %v1453 = vunpack.c.l.b16 %v722
        %v1454 = vunpack.c.h.b16 %v722
        %v1455 = vunpack.c.l.b16 %v723
        %v1456 = vunpack.c.h.b16 %v723
        %v1457 = vunpack.c.l.b16 %v724
        %v1458 = vunpack.c.h.b16 %v724
        %v1459 = vunpack.c.l.b16 %v725
        %v1460 = vunpack.c.h.b16 %v725
        %v1461 = vunpack.c.l.b16 %v726
        %v1462 = vunpack.c.h.b16 %v726
        %v1463 = vunpack.c.l.b16 %v727
        %v1464 = vunpack.c.h.b16 %v727
        %v1465 = vunpack.c.l.b16 %v728
        %v1466 = vunpack.c.h.b16 %v728
        %v1467 = vunpack.c.l.b16 %v729
        %v1468 = vunpack.c.h.b16 %v729
        %v1469 = vunpack.c.l.b16 %v730
        %v1470 = vunpack.c.h.b16 %v730
        %v1471 = vunpack.c.l.b16 %v731
        %v1472 = vunpack.c.h.b16 %v731
        %v1473 = vunpack.c.l.b16 %v732
        %v1474 = vunpack.c.h.b16 %v732
        %v1475 = vunpack.c.l.b16 %v733
        %v1476 = vunpack.c.h.b16 %v733
        %v1477 = vunpack.c.l.b16 %v734
        %v1478 = vunpack.c.h.b16 %v734
        %v1479 = vunpack.c.l.b16 %v735
        %v1480 = vunpack.c.h.b16 %v735
        %v1481 = vunpack.c.l.b16 %v736
        %v1482 = vunpack.c.h.b16 %v736
        %v1483 = vunpack.c.l.b16 %v737
        %v1484 = vunpack.c.h.b16 %v737
        %v1485 = vunpack.c.l.b16 %v738
        %v1486 = vunpack.c.h.b16 %v738
        %v1487 = vunpack.c.l.b16 %v739
        %v1488 = vunpack.c.h.b16 %v739
        %v1489 = vunpack.c.l.b16 %v740
        %v1490 = vunpack.c.h.b16 %v740
        %v1491 = vunpack.c.l.b16 %v741
        %v1492 = vunpack.c.h.b16 %v741
        %v1493 = vunpack.c.l.b16 %v742
        %v1494 = vunpack.c.h.b16 %v742
        %v1495 = vunpack.c.l.b16 %v743
        %v1496 = vunpack.c.h.b16 %v743
        %v1497 = vunpack.c.l.b16 %v744
        %v1498 = vunpack.c.h.b16 %v744
        %v1499 = vunpack.c.l.b16 %v745
        %v1500 = vunpack.c.h.b16 %v745
        %v1501 = vunpack.c.l.b16 %v746
        %v1502 = vunpack.c.h.b16 %v746
        %v1503 = vunpack.c.l.b16 %v747
        %v1504 = vunpack.c.h.b16 %v747
        %v1505 = vunpack.c.l.b16 %v748
        %v1506 = vunpack.c.h.b16 %v748
        %v1507 = vunpack.c.l.b16 %v749
        %v1508 = vunpack.c.h.b16 %v749
        %v1509 = vunpack.c.l.b16 %v750
        %v1510 = vunpack.c.h.b16 %v750
        %v1511 = vunpack.c.l.b16 %v751
        %v1512 = vunpack.c.h.b16 %v751
        %v1513 = vunpack.c.l.b16 %v752
        %v1514 = vunpack.c.h.b16 %v752
        %v1515 = vunpack.c.l.b16 %v753
        %v1516 = vunpack.c.h.b16 %v753
        %v1517 = vunpack.c.l.b16 %v754
        %v1518 = vunpack.c.h.b16 %v754
        %v1519 = vunpack.c.l.b16 %v755
        %v1520 = vunpack.c.h.b16 %v755
        %v1521 = vunpack.c.l.b16 %v756
        %v1522 = vunpack.c.h.b16 %v756
        %v1523 = vunpack.c.l.b16 %v757
        %v1524 = vunpack.c.h.b16 %v757
        %v1525 = vunpack.c.l.b16 %v758
        %v1526 = vunpack.c.h.b16 %v758
        %v1527 = vunpack.c.l.b16 %v759
        %v1528 = vunpack.c.h.b16 %v759
        %v1529 = vunpack.c.l.b16 %v760
        %v1530 = vunpack.c.h.b16 %v760
        %v1531 = vunpack.c.l.b16 %v761
        %v1532 = vunpack.c.h.b16 %v761
        %v1533 = vunpack.c.l.b16 %v762
        %v1534 = vunpack.c.h.b16 %v762
        %v1535 = vunpack.c.l.b16 %v763
        %v1536 = vunpack.c.h.b16 %v763
        %v1537 = vunpack.c.l.b16 %v764
        %v1538 = vunpack.c.h.b16 %v764
        %v1539 = vunpack.c.l.b16 %v765
        %v1540 = vunpack.c.h.b16 %v765
        %v1541 = vunpack.c.l.b16 %v766
        %v1542 = vunpack.c.h.b16 %v766
        %v1543 = vunpack.c.l.b16 %v767
        %v1544 = vunpack.c.h.b16 %v767
        %v1545 = vunpack.c.l.b16 %v768
        %v1546 = vunpack.c.h.b16 %v768
        %v1547 = vunpack.c.l.b16 %v769
        %v1548 = vunpack.c.h.b16 %v769
        %v1549 = vunpack.c.l.b16 %v770
        %v1550 = vunpack.c.h.b16 %v770
        %v1551 = vunpack.c.l.b16 %v771
        %v1552 = vunpack.c.h.b16 %v771
        %v1553 = vunpack.c.l.b16 %v772
        %v1554 = vunpack.c.h.b16 %v772
        %v1555 = vunpack.c.l.b16 %v773
        %v1556 = vunpack.c.h.b16 %v773
        %v1557 = vunpack.c.l.b16 %v774
        %v1558 = vunpack.c.h.b16 %v774
        %v1559 = vunpack.c.l.b16 %v775
        %v1560 = vunpack.c.h.b16 %v775
        %v1561 = vunpack.c.l.b16 %v776
        %v1562 = vunpack.c.h.b16 %v776
        %v1563 = vpack.c.b16 %v1055, %v1051
        %v1564 = vpack.c.b16 %v1056, %v1052
        %v1565 = vpack.c.b16 %v1057, %v1053
        %v1566 = vpack.c.b16 %v1058, %v1054
        %v1567 = vpack.c.b16 %v1063, %v1059
        %v1568 = vpack.c.b16 %v1064, %v1060
        %v1569 = vpack.c.b16 %v1065, %v1061
        %v1570 = vpack.c.b16 %v1066, %v1062
        %v1571 = vpack.c.b16 %v1071, %v1067
        %v1572 = vpack.c.b16 %v1072, %v1068
        %v1573 = vpack.c.b16 %v1073, %v1069
        %v1574 = vpack.c.b16 %v1074, %v1070
        %v1575 = vpack.c.b16 %v1079, %v1075
        %v1576 = vpack.c.b16 %v1080, %v1076
        %v1577 = vpack.c.b16 %v1081, %v1077
        %v1578 = vpack.c.b16 %v1082, %v1078
        %v1579 = vpack.c.b16 %v1087, %v1083
        %v1580 = vpack.c.b16 %v1088, %v1084
        %v1581 = vpack.c.b16 %v1089, %v1085
        %v1582 = vpack.c.b16 %v1090, %v1086
        %v1583 = vpack.c.b16 %v1095, %v1091
        %v1584 = vpack.c.b16 %v1096, %v1092
        %v1585 = vpack.c.b16 %v1097, %v1093
        %v1586 = vpack.c.b16 %v1098, %v1094
        %v1587 = vpack.c.b16 %v1103, %v1099
        %v1588 = vpack.c.b16 %v1104, %v1100
        %v1589 = vpack.c.b16 %v1105, %v1101
        %v1590 = vpack.c.b16 %v1106, %v1102
        %v1591 = vpack.c.b16 %v1111, %v1107
        %v1592 = vpack.c.b16 %v1112, %v1108
        %v1593 = vpack.c.b16 %v1113, %v1109
        %v1594 = vpack.c.b16 %v1114, %v1110
        %v1595 = vpack.c.b16 %v1119, %v1115
        %v1596 = vpack.c.b16 %v1120, %v1116
        %v1597 = vpack.c.b16 %v1121, %v1117
        %v1598 = vpack.c.b16 %v1122, %v1118
        %v1599 = vpack.c.b16 %v1127, %v1123
        %v1600 = vpack.c.b16 %v1128, %v1124
        %v1601 = vpack.c.b16 %v1129, %v1125
        %v1602 = vpack.c.b16 %v1130, %v1126
        %v1603 = vpack.c.b16 %v1135, %v1131
        %v1604 = vpack.c.b16 %v1136, %v1132
        %v1605 = vpack.c.b16 %v1137, %v1133
        %v1606 = vpack.c.b16 %v1138, %v1134
        %v1607 = vpack.c.b16 %v1143, %v1139
        %v1608 = vpack.c.b16 %v1144, %v1140
        %v1609 = vpack.c.b16 %v1145, %v1141
        %v1610 = vpack.c.b16 %v1146, %v1142
        %v1611 = vpack.c.b16 %v1151, %v1147
        %v1612 = vpack.c.b16 %v1152, %v1148
        %v1613 = vpack.c.b16 %v1153, %v1149
        %v1614 = vpack.c.b16 %v1154, %v1150
        %v1615 = vpack.c.b16 %v1159, %v1155
        %v1616 = vpack.c.b16 %v1160, %v1156
        %v1617 = vpack.c.b16 %v1161, %v1157
        %v1618 = vpack.c.b16 %v1162, %v1158
        %v1619 = vpack.c.b16 %v1167, %v1163
        %v1620 = vpack.c.b16 %v1168, %v1164
        %v1621 = vpack.c.b16 %v1169, %v1165
        %v1622 = vpack.c.b16 %v1170, %v1166
        %v1623 = vpack.c.b16 %v1175, %v1171
        %v1624 = vpack.c.b16 %v1176, %v1172
        %v1625 = vpack.c.b16 %v1177, %v1173
        %v1626 = vpack.c.b16 %v1178, %v1174
        %v1627 = vpack.c.b16 %v1183, %v1179
        %v1628 = vpack.c.b16 %v1184, %v1180
        %v1629 = vpack.c.b16 %v1185, %v1181
        %v1630 = vpack.c.b16 %v1186, %v1182
        %v1631 = vpack.c.b16 %v1191, %v1187
        %v1632 = vpack.c.b16 %v1192, %v1188
        %v1633 = vpack.c.b16 %v1193, %v1189
        %v1634 = vpack.c.b16 %v1194, %v1190
        %v1635 = vpack.c.b16 %v1199, %v1195
        %v1636 = vpack.c.b16 %v1200, %v1196
        %v1637 = vpack.c.b16 %v1201, %v1197
        %v1638 = vpack.c.b16 %v1202, %v1198
        %v1639 = vpack.c.b16 %v1207, %v1203
        %v1640 = vpack.c.b16 %v1208, %v1204
        %v1641 = vpack.c.b16 %v1209, %v1205
        %v1642 = vpack.c.b16 %v1210, %v1206
        %v1643 = vpack.c.b16 %v1215, %v1211
        %v1644 = vpack.c.b16 %v1216, %v1212
        %v1645 = vpack.c.b16 %v1217, %v1213
        %v1646 = vpack.c.b16 %v1218, %v1214
        %v1647 = vpack.c.b16 %v1223, %v1219
        %v1648 = vpack.c.b16 %v1224, %v1220
        %v1649 = vpack.c.b16 %v1225, %v1221
        %v1650 = vpack.c.b16 %v1226, %v1222
        %v1651 = vpack.c.b16 %v1231, %v1227
        %v1652 = vpack.c.b16 %v1232, %v1228
        %v1653 = vpack.c.b16 %v1233, %v1229
        %v1654 = vpack.c.b16 %v1234, %v1230
        %v1655 = vpack.c.b16 %v1239, %v1235
        %v1656 = vpack.c.b16 %v1240, %v1236
        %v1657 = vpack.c.b16 %v1241, %v1237
        %v1658 = vpack.c.b16 %v1242, %v1238
        %v1659 = vpack.c.b16 %v1247, %v1243
        %v1660 = vpack.c.b16 %v1248, %v1244
        %v1661 = vpack.c.b16 %v1249, %v1245
        %v1662 = vpack.c.b16 %v1250, %v1246
        %v1663 = vpack.c.b16 %v1255, %v1251
        %v1664 = vpack.c.b16 %v1256, %v1252
        %v1665 = vpack.c.b16 %v1257, %v1253
        %v1666 = vpack.c.b16 %v1258, %v1254
        %v1667 = vpack.c.b16 %v1263, %v1259
        %v1668 = vpack.c.b16 %v1264, %v1260
        %v1669 = vpack.c.b16 %v1265, %v1261
        %v1670 = vpack.c.b16 %v1266, %v1262
        %v1671 = vpack.c.b16 %v1271, %v1267
        %v1672 = vpack.c.b16 %v1272, %v1268
        %v1673 = vpack.c.b16 %v1273, %v1269
        %v1674 = vpack.c.b16 %v1274, %v1270
        %v1675 = vpack.c.b16 %v1279, %v1275
        %v1676 = vpack.c.b16 %v1280, %v1276
        %v1677 = vpack.c.b16 %v1281, %v1277
        %v1678 = vpack.c.b16 %v1282, %v1278
        %v1679 = vpack.c.b16 %v1287, %v1283
        %v1680 = vpack.c.b16 %v1288, %v1284
        %v1681 = vpack.c.b16 %v1289, %v1285
        %v1682 = vpack.c.b16 %v1290, %v1286
        %v1683 = vpack.c.b16 %v1295, %v1291
        %v1684 = vpack.c.b16 %v1296, %v1292
        %v1685 = vpack.c.b16 %v1297, %v1293
        %v1686 = vpack.c.b16 %v1298, %v1294
        %v1687 = vpack.c.b16 %v1303, %v1299
        %v1688 = vpack.c.b16 %v1304, %v1300
        %v1689 = vpack.c.b16 %v1305, %v1301
        %v1690 = vpack.c.b16 %v1306, %v1302
        %v1691 = vpack.c.b16 %v1311, %v1307
        %v1692 = vpack.c.b16 %v1312, %v1308
        %v1693 = vpack.c.b16 %v1313, %v1309
        %v1694 = vpack.c.b16 %v1314, %v1310
        %v1695 = vpack.c.b16 %v1319, %v1315
        %v1696 = vpack.c.b16 %v1320, %v1316
        %v1697 = vpack.c.b16 %v1321, %v1317
        %v1698 = vpack.c.b16 %v1322, %v1318
        %v1699 = vpack.c.b16 %v1327, %v1323
        %v1700 = vpack.c.b16 %v1328, %v1324
        %v1701 = vpack.c.b16 %v1329, %v1325
        %v1702 = vpack.c.b16 %v1330, %v1326
        %v1703 = vpack.c.b16 %v1335, %v1331
        %v1704 = vpack.c.b16 %v1336, %v1332
        %v1705 = vpack.c.b16 %v1337, %v1333
        %v1706 = vpack.c.b16 %v1338, %v1334
        %v1707 = vpack.c.b16 %v1343, %v1339
        %v1708 = vpack.c.b16 %v1344, %v1340
        %v1709 = vpack.c.b16 %v1345, %v1341
        %v1710 = vpack.c.b16 %v1346, %v1342
        %v1711 = vpack.c.b16 %v1351, %v1347
        %v1712 = vpack.c.b16 %v1352, %v1348
        %v1713 = vpack.c.b16 %v1353, %v1349
        %v1714 = vpack.c.b16 %v1354, %v1350
        %v1715 = vpack.c.b16 %v1359, %v1355
        %v1716 = vpack.c.b16 %v1360, %v1356
        %v1717 = vpack.c.b16 %v1361, %v1357
        %v1718 = vpack.c.b16 %v1362, %v1358
        %v1719 = vpack.c.b16 %v1367, %v1363
        %v1720 = vpack.c.b16 %v1368, %v1364
        %v1721 = vpack.c.b16 %v1369, %v1365
        %v1722 = vpack.c.b16 %v1370, %v1366
        %v1723 = vpack.c.b16 %v1375, %v1371
        %v1724 = vpack.c.b16 %v1376, %v1372
        %v1725 = vpack.c.b16 %v1377, %v1373
        %v1726 = vpack.c.b16 %v1378, %v1374
        %v1727 = vpack.c.b16 %v1383, %v1379
        %v1728 = vpack.c.b16 %v1384, %v1380
        %v1729 = vpack.c.b16 %v1385, %v1381
        %v1730 = vpack.c.b16 %v1386, %v1382
        %v1731 = vpack.c.b16 %v1391, %v1387
        %v1732 = vpack.c.b16 %v1392, %v1388
        %v1733 = vpack.c.b16 %v1393, %v1389
        %v1734 = vpack.c.b16 %v1394, %v1390
        %v1735 = vpack.c.b16 %v1399, %v1395
        %v1736 = vpack.c.b16 %v1400, %v1396
        %v1737 = vpack.c.b16 %v1401, %v1397
        %v1738 = vpack.c.b16 %v1402, %v1398
        %v1739 = vpack.c.b16 %v1407, %v1403
        %v1740 = vpack.c.b16 %v1408, %v1404
        %v1741 = vpack.c.b16 %v1409, %v1405
        %v1742 = vpack.c.b16 %v1410, %v1406
        %v1743 = vpack.c.b16 %v1415, %v1411
        %v1744 = vpack.c.b16 %v1416, %v1412
        %v1745 = vpack.c.b16 %v1417, %v1413
        %v1746 = vpack.c.b16 %v1418, %v1414
        %v1747 = vpack.c.b16 %v1423, %v1419
        %v1748 = vpack.c.b16 %v1424, %v1420
        %v1749 = vpack.c.b16 %v1425, %v1421
        %v1750 = vpack.c.b16 %v1426, %v1422
        %v1751 = vpack.c.b16 %v1431, %v1427
        %v1752 = vpack.c.b16 %v1432, %v1428
        %v1753 = vpack.c.b16 %v1433, %v1429
        %v1754 = vpack.c.b16 %v1434, %v1430
        %v1755 = vpack.c.b16 %v1439, %v1435
        %v1756 = vpack.c.b16 %v1440, %v1436
        %v1757 = vpack.c.b16 %v1441, %v1437
        %v1758 = vpack.c.b16 %v1442, %v1438
        %v1759 = vpack.c.b16 %v1447, %v1443
        %v1760 = vpack.c.b16 %v1448, %v1444
        %v1761 = vpack.c.b16 %v1449, %v1445
        %v1762 = vpack.c.b16 %v1450, %v1446
        %v1763 = vpack.c.b16 %v1455, %v1451
        %v1764 = vpack.c.b16 %v1456, %v1452
        %v1765 = vpack.c.b16 %v1457, %v1453
        %v1766 = vpack.c.b16 %v1458, %v1454
        %v1767 = vpack.c.b16 %v1463, %v1459
        %v1768 = vpack.c.b16 %v1464, %v1460
        %v1769 = vpack.c.b16 %v1465, %v1461
        %v1770 = vpack.c.b16 %v1466, %v1462
        %v1771 = vpack.c.b16 %v1471, %v1467
        %v1772 = vpack.c.b16 %v1472, %v1468
        %v1773 = vpack.c.b16 %v1473, %v1469
        %v1774 = vpack.c.b16 %v1474, %v1470
        %v1775 = vpack.c.b16 %v1479, %v1475
        %v1776 = vpack.c.b16 %v1480, %v1476
        %v1777 = vpack.c.b16 %v1481, %v1477
        %v1778 = vpack.c.b16 %v1482, %v1478
        %v1779 = vpack.c.b16 %v1487, %v1483
        %v1780 = vpack.c.b16 %v1488, %v1484
        %v1781 = vpack.c.b16 %v1489, %v1485
        %v1782 = vpack.c.b16 %v1490, %v1486
        %v1783 = vpack.c.b16 %v1495, %v1491
        %v1784 = vpack.c.b16 %v1496, %v1492
        %v1785 = vpack.c.b16 %v1497, %v1493
        %v1786 = vpack.c.b16 %v1498, %v1494
        %v1787 = vpack.c.b16 %v1503, %v1499
        %v1788 = vpack.c.b16 %v1504, %v1500
        %v1789 = vpack.c.b16 %v1505, %v1501
        %v1790 = vpack.c.b16 %v1506, %v1502
        %v1791 = vpack.c.b16 %v1511, %v1507
        %v1792 = vpack.c.b16 %v1512, %v1508
        %v1793 = vpack.c.b16 %v1513, %v1509
        %v1794 = vpack.c.b16 %v1514, %v1510
        %v1795 = vpack.c.b16 %v1519, %v1515
        %v1796 = vpack.c.b16 %v1520, %v1516
        %v1797 = vpack.c.b16 %v1521, %v1517
        %v1798 = vpack.c.b16 %v1522, %v1518
        %v1799 = vpack.c.b16 %v1527, %v1523
        %v1800 = vpack.c.b16 %v1528, %v1524
        %v1801 = vpack.c.b16 %v1529, %v1525
        %v1802 = vpack.c.b16 %v1530, %v1526
        %v1803 = vpack.c.b16 %v1535, %v1531
        %v1804 = vpack.c.b16 %v1536, %v1532
        %v1805 = vpack.c.b16 %v1537, %v1533
        %v1806 = vpack.c.b16 %v1538, %v1534
        %v1807 = vpack.c.b16 %v1543, %v1539
        %v1808 = vpack.c.b16 %v1544, %v1540
        %v1809 = vpack.c.b16 %v1545, %v1541
        %v1810 = vpack.c.b16 %v1546, %v1542
        %v1811 = vpack.c.b16 %v1551, %v1547
        %v1812 = vpack.c.b16 %v1552, %v1548
        %v1813 = vpack.c.b16 %v1553, %v1549
        %v1814 = vpack.c.b16 %v1554, %v1550
        %v1815 = vpack.c.b16 %v1559, %v1555
        %v1816 = vpack.c.b16 %v1560, %v1556
        %v1817 = vpack.c.b16 %v1561, %v1557
        %v1818 = vpack.c.b16 %v1562, %v1558
        %2075 = vmatpush.bf16.msra.mxu0 %v1591
        %2076 = vmatpush.bf16.msra.mxu0 %v1587
        %2077 = vmatpush.bf16.msra.mxu0 %v1583
        %2078 = vmatpush.bf16.msra.mxu0 %v1579
        %2079 = vmatpush.bf16.msra.mxu0 %v1575
        %2080 = vmatpush.bf16.msra.mxu0 %v1571
        %2081 = vmatpush.bf16.msra.mxu0 %v1567
        %2082 = vmatpush.bf16.msra.mxu0 %v1563
        %2083 = vmatmul.bf16.gmra.mxu0 %v779
        %v2084 = vpop.f32.mrf.mxu0
        %v2085 = vadd.f32 0.0, %v2084
        %v2086 = vpop.f32.mrf.mxu0
        %2087 = vdwg.mxu0
        %2088 = vmatpush.bf16.msra.mxu0 %v1623
        %2089 = vmatpush.bf16.msra.mxu0 %v1619
        %2090 = vmatpush.bf16.msra.mxu0 %v1615
        %2091 = vmatpush.bf16.msra.mxu0 %v1611
        %2092 = vmatpush.bf16.msra.mxu0 %v1607
        %2093 = vmatpush.bf16.msra.mxu0 %v1603
        %2094 = vmatpush.bf16.msra.mxu0 %v1599
        %2095 = vmatpush.bf16.msra.mxu0 %v1595
        %2096 = vmatmul.bf16.gmra.mxu0 %v780
        %v2097 = vpop.f32.mrf.mxu0
        %v2098 = vadd.f32 %v2085, %v2097
        %v2099 = vpop.f32.mrf.mxu0
        %2100 = vdwg.mxu0
        %2101 = vmatpush.bf16.msra.mxu0 %v1655
        %2102 = vmatpush.bf16.msra.mxu0 %v1651
        %2103 = vmatpush.bf16.msra.mxu0 %v1647
        %2104 = vmatpush.bf16.msra.mxu0 %v1643
        %2105 = vmatpush.bf16.msra.mxu0 %v1639
        %2106 = vmatpush.bf16.msra.mxu0 %v1635
        %2107 = vmatpush.bf16.msra.mxu0 %v1631
        %2108 = vmatpush.bf16.msra.mxu0 %v1627
        %2109 = vmatmul.bf16.gmra.mxu0 %v781
        %v2110 = vpop.f32.mrf.mxu0
        %v2111 = vadd.f32 %v2098, %v2110
        %v2112 = vpop.f32.mrf.mxu0
        %2113 = vdwg.mxu0
        %2114 = vmatpush.bf16.msra.mxu0 %v1687
        %2115 = vmatpush.bf16.msra.mxu0 %v1683
        %2116 = vmatpush.bf16.msra.mxu0 %v1679
        %2117 = vmatpush.bf16.msra.mxu0 %v1675
        %2118 = vmatpush.bf16.msra.mxu0 %v1671
        %2119 = vmatpush.bf16.msra.mxu0 %v1667
        %2120 = vmatpush.bf16.msra.mxu0 %v1663
        %2121 = vmatpush.bf16.msra.mxu0 %v1659
        %2122 = vmatmul.bf16.gmra.mxu0 %v782
        %v2123 = vpop.f32.mrf.mxu0
        %v2124 = vadd.f32 %v2111, %v2123
        %v2125 = vpop.f32.mrf.mxu0
        %2126 = vdwg.mxu0
        %2127 = vmatpush.bf16.msra.mxu0 %v1719
        %2128 = vmatpush.bf16.msra.mxu0 %v1715
        %2129 = vmatpush.bf16.msra.mxu0 %v1711
        %2130 = vmatpush.bf16.msra.mxu0 %v1707
        %2131 = vmatpush.bf16.msra.mxu0 %v1703
        %2132 = vmatpush.bf16.msra.mxu0 %v1699
        %2133 = vmatpush.bf16.msra.mxu0 %v1695
        %2134 = vmatpush.bf16.msra.mxu0 %v1691
        %2135 = vmatmul.bf16.gmra.mxu0 %v783
        %v2136 = vpop.f32.mrf.mxu0
        %v2137 = vadd.f32 %v2124, %v2136
        %v2138 = vpop.f32.mrf.mxu0
        %2139 = vdwg.mxu0
        %2140 = vmatpush.bf16.msra.mxu0 %v1751
        %2141 = vmatpush.bf16.msra.mxu0 %v1747
        %2142 = vmatpush.bf16.msra.mxu0 %v1743
        %2143 = vmatpush.bf16.msra.mxu0 %v1739
        %2144 = vmatpush.bf16.msra.mxu0 %v1735
        %2145 = vmatpush.bf16.msra.mxu0 %v1731
        %2146 = vmatpush.bf16.msra.mxu0 %v1727
        %2147 = vmatpush.bf16.msra.mxu0 %v1723
        %2148 = vmatmul.bf16.gmra.mxu0 %v784
        %v2149 = vpop.f32.mrf.mxu0
        %v2150 = vadd.f32 %v2137, %v2149
        %v2151 = vpop.f32.mrf.mxu0
        %2152 = vdwg.mxu0
        %2153 = vmatpush.bf16.msra.mxu0 %v1783
        %2154 = vmatpush.bf16.msra.mxu0 %v1779
        %2155 = vmatpush.bf16.msra.mxu0 %v1775
        %2156 = vmatpush.bf16.msra.mxu0 %v1771
        %2157 = vmatpush.bf16.msra.mxu0 %v1767
        %2158 = vmatpush.bf16.msra.mxu0 %v1763
        %2159 = vmatpush.bf16.msra.mxu0 %v1759
        %2160 = vmatpush.bf16.msra.mxu0 %v1755
        %2161 = vmatmul.bf16.gmra.mxu0 %v785
        %v2162 = vpop.f32.mrf.mxu0
        %v2163 = vadd.f32 %v2150, %v2162
        %v2164 = vpop.f32.mrf.mxu0
        %2165 = vdwg.mxu0
        %2166 = vmatpush.bf16.msra.mxu0 %v1815
        %2167 = vmatpush.bf16.msra.mxu0 %v1811
        %2168 = vmatpush.bf16.msra.mxu0 %v1807
        %2169 = vmatpush.bf16.msra.mxu0 %v1803
        %2170 = vmatpush.bf16.msra.mxu0 %v1799
        %2171 = vmatpush.bf16.msra.mxu0 %v1795
        %2172 = vmatpush.bf16.msra.mxu0 %v1791
        %2173 = vmatpush.bf16.msra.mxu0 %v1787
        %2174 = vmatmul.bf16.gmra.mxu0 %v786
        %v2175 = vpop.f32.mrf.mxu0
        %v2176 = vadd.f32 %v2163, %v2175
        %v2177 = vpop.f32.mrf.mxu0
        %2178 = vdwg.mxu0
        %2179 = vmatpush.bf16.msra.mxu0 %v1592
        %2180 = vmatpush.bf16.msra.mxu0 %v1588
        %2181 = vmatpush.bf16.msra.mxu0 %v1584
        %2182 = vmatpush.bf16.msra.mxu0 %v1580
        %2183 = vmatpush.bf16.msra.mxu0 %v1576
        %2184 = vmatpush.bf16.msra.mxu0 %v1572
        %2185 = vmatpush.bf16.msra.mxu0 %v1568
        %2186 = vmatpush.bf16.msra.mxu0 %v1564
        %2187 = vmatmul.bf16.gmra.mxu0 %v779
        %v2188 = vpop.f32.mrf.mxu0
        %v2189 = vadd.f32 0.0, %v2188
        %v2190 = vpop.f32.mrf.mxu0
        %2191 = vdwg.mxu0
        %2192 = vmatpush.bf16.msra.mxu0 %v1624
        %2193 = vmatpush.bf16.msra.mxu0 %v1620
        %2194 = vmatpush.bf16.msra.mxu0 %v1616
        %2195 = vmatpush.bf16.msra.mxu0 %v1612
        %2196 = vmatpush.bf16.msra.mxu0 %v1608
        %2197 = vmatpush.bf16.msra.mxu0 %v1604
        %2198 = vmatpush.bf16.msra.mxu0 %v1600
        %2199 = vmatpush.bf16.msra.mxu0 %v1596
        %2200 = vmatmul.bf16.gmra.mxu0 %v780
        %v2201 = vpop.f32.mrf.mxu0
        %v2202 = vadd.f32 %v2189, %v2201
        %v2203 = vpop.f32.mrf.mxu0
        %2204 = vdwg.mxu0
        %2205 = vmatpush.bf16.msra.mxu0 %v1656
        %2206 = vmatpush.bf16.msra.mxu0 %v1652
        %2207 = vmatpush.bf16.msra.mxu0 %v1648
        %2208 = vmatpush.bf16.msra.mxu0 %v1644
        %2209 = vmatpush.bf16.msra.mxu0 %v1640
        %2210 = vmatpush.bf16.msra.mxu0 %v1636
        %2211 = vmatpush.bf16.msra.mxu0 %v1632
        %2212 = vmatpush.bf16.msra.mxu0 %v1628
        %2213 = vmatmul.bf16.gmra.mxu0 %v781
        %v2214 = vpop.f32.mrf.mxu0
        %v2215 = vadd.f32 %v2202, %v2214
        %v2216 = vpop.f32.mrf.mxu0
        %2217 = vdwg.mxu0
        %2218 = vmatpush.bf16.msra.mxu0 %v1688
        %2219 = vmatpush.bf16.msra.mxu0 %v1684
        %2220 = vmatpush.bf16.msra.mxu0 %v1680
        %2221 = vmatpush.bf16.msra.mxu0 %v1676
        %2222 = vmatpush.bf16.msra.mxu0 %v1672
        %2223 = vmatpush.bf16.msra.mxu0 %v1668
        %2224 = vmatpush.bf16.msra.mxu0 %v1664
        %2225 = vmatpush.bf16.msra.mxu0 %v1660
        %2226 = vmatmul.bf16.gmra.mxu0 %v782
        %v2227 = vpop.f32.mrf.mxu0
        %v2228 = vadd.f32 %v2215, %v2227
        %v2229 = vpop.f32.mrf.mxu0
        %2230 = vdwg.mxu0
        %2231 = vmatpush.bf16.msra.mxu0 %v1720
        %2232 = vmatpush.bf16.msra.mxu0 %v1716
        %2233 = vmatpush.bf16.msra.mxu0 %v1712
        %2234 = vmatpush.bf16.msra.mxu0 %v1708
        %2235 = vmatpush.bf16.msra.mxu0 %v1704
        %2236 = vmatpush.bf16.msra.mxu0 %v1700
        %2237 = vmatpush.bf16.msra.mxu0 %v1696
        %2238 = vmatpush.bf16.msra.mxu0 %v1692
        %2239 = vmatmul.bf16.gmra.mxu0 %v783
        %v2240 = vpop.f32.mrf.mxu0
        %v2241 = vadd.f32 %v2228, %v2240
        %v2242 = vpop.f32.mrf.mxu0
        %2243 = vdwg.mxu0
        %2244 = vmatpush.bf16.msra.mxu0 %v1752
        %2245 = vmatpush.bf16.msra.mxu0 %v1748
        %2246 = vmatpush.bf16.msra.mxu0 %v1744
        %2247 = vmatpush.bf16.msra.mxu0 %v1740
        %2248 = vmatpush.bf16.msra.mxu0 %v1736
        %2249 = vmatpush.bf16.msra.mxu0 %v1732
        %2250 = vmatpush.bf16.msra.mxu0 %v1728
        %2251 = vmatpush.bf16.msra.mxu0 %v1724
        %2252 = vmatmul.bf16.gmra.mxu0 %v784
        %v2253 = vpop.f32.mrf.mxu0
        %v2254 = vadd.f32 %v2241, %v2253
        %v2255 = vpop.f32.mrf.mxu0
        %2256 = vdwg.mxu0
        %2257 = vmatpush.bf16.msra.mxu0 %v1784
        %2258 = vmatpush.bf16.msra.mxu0 %v1780
        %2259 = vmatpush.bf16.msra.mxu0 %v1776
        %2260 = vmatpush.bf16.msra.mxu0 %v1772
        %2261 = vmatpush.bf16.msra.mxu0 %v1768
        %2262 = vmatpush.bf16.msra.mxu0 %v1764
        %2263 = vmatpush.bf16.msra.mxu0 %v1760
        %2264 = vmatpush.bf16.msra.mxu0 %v1756
        %2265 = vmatmul.bf16.gmra.mxu0 %v785
        %v2266 = vpop.f32.mrf.mxu0
        %v2267 = vadd.f32 %v2254, %v2266
        %v2268 = vpop.f32.mrf.mxu0
        %2269 = vdwg.mxu0
        %2270 = vmatpush.bf16.msra.mxu0 %v1816
        %2271 = vmatpush.bf16.msra.mxu0 %v1812
        %2272 = vmatpush.bf16.msra.mxu0 %v1808
        %2273 = vmatpush.bf16.msra.mxu0 %v1804
        %2274 = vmatpush.bf16.msra.mxu0 %v1800
        %2275 = vmatpush.bf16.msra.mxu0 %v1796
        %2276 = vmatpush.bf16.msra.mxu0 %v1792
        %2277 = vmatpush.bf16.msra.mxu0 %v1788
        %2278 = vmatmul.bf16.gmra.mxu0 %v786
        %v2279 = vpop.f32.mrf.mxu0
        %v2280 = vadd.f32 %v2267, %v2279
        %v2281 = vpop.f32.mrf.mxu0
        %2282 = vdwg.mxu0
        %2283 = vmatpush.bf16.msra.mxu0 %v1593
        %2284 = vmatpush.bf16.msra.mxu0 %v1589
        %2285 = vmatpush.bf16.msra.mxu0 %v1585
        %2286 = vmatpush.bf16.msra.mxu0 %v1581
        %2287 = vmatpush.bf16.msra.mxu0 %v1577
        %2288 = vmatpush.bf16.msra.mxu0 %v1573
        %2289 = vmatpush.bf16.msra.mxu0 %v1569
        %2290 = vmatpush.bf16.msra.mxu0 %v1565
        %2291 = vmatmul.bf16.gmra.mxu0 %v779
        %v2292 = vpop.f32.mrf.mxu0
        %v2293 = vadd.f32 0.0, %v2292
        %v2294 = vpop.f32.mrf.mxu0
        %2295 = vdwg.mxu0
        %2296 = vmatpush.bf16.msra.mxu0 %v1625
        %2297 = vmatpush.bf16.msra.mxu0 %v1621
        %2298 = vmatpush.bf16.msra.mxu0 %v1617
        %2299 = vmatpush.bf16.msra.mxu0 %v1613
        %2300 = vmatpush.bf16.msra.mxu0 %v1609
        %2301 = vmatpush.bf16.msra.mxu0 %v1605
        %2302 = vmatpush.bf16.msra.mxu0 %v1601
        %2303 = vmatpush.bf16.msra.mxu0 %v1597
        %2304 = vmatmul.bf16.gmra.mxu0 %v780
        %v2305 = vpop.f32.mrf.mxu0
        %v2306 = vadd.f32 %v2293, %v2305
        %v2307 = vpop.f32.mrf.mxu0
        %2308 = vdwg.mxu0
        %2309 = vmatpush.bf16.msra.mxu0 %v1657
        %2310 = vmatpush.bf16.msra.mxu0 %v1653
        %2311 = vmatpush.bf16.msra.mxu0 %v1649
        %2312 = vmatpush.bf16.msra.mxu0 %v1645
        %2313 = vmatpush.bf16.msra.mxu0 %v1641
        %2314 = vmatpush.bf16.msra.mxu0 %v1637
        %2315 = vmatpush.bf16.msra.mxu0 %v1633
        %2316 = vmatpush.bf16.msra.mxu0 %v1629
        %2317 = vmatmul.bf16.gmra.mxu0 %v781
        %v2318 = vpop.f32.mrf.mxu0
        %v2319 = vadd.f32 %v2306, %v2318
        %v2320 = vpop.f32.mrf.mxu0
        %2321 = vdwg.mxu0
        %2322 = vmatpush.bf16.msra.mxu0 %v1689
        %2323 = vmatpush.bf16.msra.mxu0 %v1685
        %2324 = vmatpush.bf16.msra.mxu0 %v1681
        %2325 = vmatpush.bf16.msra.mxu0 %v1677
        %2326 = vmatpush.bf16.msra.mxu0 %v1673
        %2327 = vmatpush.bf16.msra.mxu0 %v1669
        %2328 = vmatpush.bf16.msra.mxu0 %v1665
        %2329 = vmatpush.bf16.msra.mxu0 %v1661
        %2330 = vmatmul.bf16.gmra.mxu0 %v782
        %v2331 = vpop.f32.mrf.mxu0
        %v2332 = vadd.f32 %v2319, %v2331
        %v2333 = vpop.f32.mrf.mxu0
        %2334 = vdwg.mxu0
        %2335 = vmatpush.bf16.msra.mxu0 %v1721
        %2336 = vmatpush.bf16.msra.mxu0 %v1717
        %2337 = vmatpush.bf16.msra.mxu0 %v1713
        %2338 = vmatpush.bf16.msra.mxu0 %v1709
        %2339 = vmatpush.bf16.msra.mxu0 %v1705
        %2340 = vmatpush.bf16.msra.mxu0 %v1701
        %2341 = vmatpush.bf16.msra.mxu0 %v1697
        %2342 = vmatpush.bf16.msra.mxu0 %v1693
        %2343 = vmatmul.bf16.gmra.mxu0 %v783
        %v2344 = vpop.f32.mrf.mxu0
        %v2345 = vadd.f32 %v2332, %v2344
        %v2346 = vpop.f32.mrf.mxu0
        %2347 = vdwg.mxu0
        %2348 = vmatpush.bf16.msra.mxu0 %v1753
        %2349 = vmatpush.bf16.msra.mxu0 %v1749
        %2350 = vmatpush.bf16.msra.mxu0 %v1745
        %2351 = vmatpush.bf16.msra.mxu0 %v1741
        %2352 = vmatpush.bf16.msra.mxu0 %v1737
        %2353 = vmatpush.bf16.msra.mxu0 %v1733
        %2354 = vmatpush.bf16.msra.mxu0 %v1729
        %2355 = vmatpush.bf16.msra.mxu0 %v1725
        %2356 = vmatmul.bf16.gmra.mxu0 %v784
        %v2357 = vpop.f32.mrf.mxu0
        %v2358 = vadd.f32 %v2345, %v2357
        %v2359 = vpop.f32.mrf.mxu0
        %2360 = vdwg.mxu0
        %2361 = vmatpush.bf16.msra.mxu0 %v1785
        %2362 = vmatpush.bf16.msra.mxu0 %v1781
        %2363 = vmatpush.bf16.msra.mxu0 %v1777
        %2364 = vmatpush.bf16.msra.mxu0 %v1773
        %2365 = vmatpush.bf16.msra.mxu0 %v1769
        %2366 = vmatpush.bf16.msra.mxu0 %v1765
        %2367 = vmatpush.bf16.msra.mxu0 %v1761
        %2368 = vmatpush.bf16.msra.mxu0 %v1757
        %2369 = vmatmul.bf16.gmra.mxu0 %v785
        %v2370 = vpop.f32.mrf.mxu0
        %v2371 = vadd.f32 %v2358, %v2370
        %v2372 = vpop.f32.mrf.mxu0
        %2373 = vdwg.mxu0
        %2374 = vmatpush.bf16.msra.mxu0 %v1817
        %2375 = vmatpush.bf16.msra.mxu0 %v1813
        %2376 = vmatpush.bf16.msra.mxu0 %v1809
        %2377 = vmatpush.bf16.msra.mxu0 %v1805
        %2378 = vmatpush.bf16.msra.mxu0 %v1801
        %2379 = vmatpush.bf16.msra.mxu0 %v1797
        %2380 = vmatpush.bf16.msra.mxu0 %v1793
        %2381 = vmatpush.bf16.msra.mxu0 %v1789
        %2382 = vmatmul.bf16.gmra.mxu0 %v786
        %v2383 = vpop.f32.mrf.mxu0
        %v2384 = vadd.f32 %v2371, %v2383
        %v2385 = vpop.f32.mrf.mxu0
        %2386 = vdwg.mxu0
        %2387 = vmatpush.bf16.msra.mxu0 %v1594
        %2388 = vmatpush.bf16.msra.mxu0 %v1590
        %2389 = vmatpush.bf16.msra.mxu0 %v1586
        %2390 = vmatpush.bf16.msra.mxu0 %v1582
        %2391 = vmatpush.bf16.msra.mxu0 %v1578
        %2392 = vmatpush.bf16.msra.mxu0 %v1574
        %2393 = vmatpush.bf16.msra.mxu0 %v1570
        %2394 = vmatpush.bf16.msra.mxu0 %v1566
        %2395 = vmatmul.bf16.gmra.mxu0 %v779
        %v2396 = vpop.f32.mrf.mxu0
        %v2397 = vadd.f32 0.0, %v2396
        %v2398 = vpop.f32.mrf.mxu0
        %2399 = vdwg.mxu0
        %2400 = vmatpush.bf16.msra.mxu0 %v1626
        %2401 = vmatpush.bf16.msra.mxu0 %v1622
        %2402 = vmatpush.bf16.msra.mxu0 %v1618
        %2403 = vmatpush.bf16.msra.mxu0 %v1614
        %2404 = vmatpush.bf16.msra.mxu0 %v1610
        %2405 = vmatpush.bf16.msra.mxu0 %v1606
        %2406 = vmatpush.bf16.msra.mxu0 %v1602
        %2407 = vmatpush.bf16.msra.mxu0 %v1598
        %2408 = vmatmul.bf16.gmra.mxu0 %v780
        %v2409 = vpop.f32.mrf.mxu0
        %v2410 = vadd.f32 %v2397, %v2409
        %v2411 = vpop.f32.mrf.mxu0
        %2412 = vdwg.mxu0
        %2413 = vmatpush.bf16.msra.mxu0 %v1658
        %2414 = vmatpush.bf16.msra.mxu0 %v1654
        %2415 = vmatpush.bf16.msra.mxu0 %v1650
        %2416 = vmatpush.bf16.msra.mxu0 %v1646
        %2417 = vmatpush.bf16.msra.mxu0 %v1642
        %2418 = vmatpush.bf16.msra.mxu0 %v1638
        %2419 = vmatpush.bf16.msra.mxu0 %v1634
        %2420 = vmatpush.bf16.msra.mxu0 %v1630
        %2421 = vmatmul.bf16.gmra.mxu0 %v781
        %v2422 = vpop.f32.mrf.mxu0
        %v2423 = vadd.f32 %v2410, %v2422
        %v2424 = vpop.f32.mrf.mxu0
        %2425 = vdwg.mxu0
        %2426 = vmatpush.bf16.msra.mxu0 %v1690
        %2427 = vmatpush.bf16.msra.mxu0 %v1686
        %2428 = vmatpush.bf16.msra.mxu0 %v1682
        %2429 = vmatpush.bf16.msra.mxu0 %v1678
        %2430 = vmatpush.bf16.msra.mxu0 %v1674
        %2431 = vmatpush.bf16.msra.mxu0 %v1670
        %2432 = vmatpush.bf16.msra.mxu0 %v1666
        %2433 = vmatpush.bf16.msra.mxu0 %v1662
        %2434 = vmatmul.bf16.gmra.mxu0 %v782
        %v2435 = vpop.f32.mrf.mxu0
        %v2436 = vadd.f32 %v2423, %v2435
        %v2437 = vpop.f32.mrf.mxu0
        %2438 = vdwg.mxu0
        %2439 = vmatpush.bf16.msra.mxu0 %v1722
        %2440 = vmatpush.bf16.msra.mxu0 %v1718
        %2441 = vmatpush.bf16.msra.mxu0 %v1714
        %2442 = vmatpush.bf16.msra.mxu0 %v1710
        %2443 = vmatpush.bf16.msra.mxu0 %v1706
        %2444 = vmatpush.bf16.msra.mxu0 %v1702
        %2445 = vmatpush.bf16.msra.mxu0 %v1698
        %2446 = vmatpush.bf16.msra.mxu0 %v1694
        %2447 = vmatmul.bf16.gmra.mxu0 %v783
        %v2448 = vpop.f32.mrf.mxu0
        %v2449 = vadd.f32 %v2436, %v2448
        %v2450 = vpop.f32.mrf.mxu0
        %2451 = vdwg.mxu0
        %2452 = vmatpush.bf16.msra.mxu0 %v1754
        %2453 = vmatpush.bf16.msra.mxu0 %v1750
        %2454 = vmatpush.bf16.msra.mxu0 %v1746
        %2455 = vmatpush.bf16.msra.mxu0 %v1742
        %2456 = vmatpush.bf16.msra.mxu0 %v1738
        %2457 = vmatpush.bf16.msra.mxu0 %v1734
        %2458 = vmatpush.bf16.msra.mxu0 %v1730
        %2459 = vmatpush.bf16.msra.mxu0 %v1726
        %2460 = vmatmul.bf16.gmra.mxu0 %v784
        %v2461 = vpop.f32.mrf.mxu0
        %v2462 = vadd.f32 %v2449, %v2461
        %v2463 = vpop.f32.mrf.mxu0
        %2464 = vdwg.mxu0
        %2465 = vmatpush.bf16.msra.mxu0 %v1786
        %2466 = vmatpush.bf16.msra.mxu0 %v1782
        %2467 = vmatpush.bf16.msra.mxu0 %v1778
        %2468 = vmatpush.bf16.msra.mxu0 %v1774
        %2469 = vmatpush.bf16.msra.mxu0 %v1770
        %2470 = vmatpush.bf16.msra.mxu0 %v1766
        %2471 = vmatpush.bf16.msra.mxu0 %v1762
        %2472 = vmatpush.bf16.msra.mxu0 %v1758
        %2473 = vmatmul.bf16.gmra.mxu0 %v785
        %v2474 = vpop.f32.mrf.mxu0
        %v2475 = vadd.f32 %v2462, %v2474
        %v2476 = vpop.f32.mrf.mxu0
        %2477 = vdwg.mxu0
        %2478 = vmatpush.bf16.msra.mxu0 %v1818
        %2479 = vmatpush.bf16.msra.mxu0 %v1814
        %2480 = vmatpush.bf16.msra.mxu0 %v1810
        %2481 = vmatpush.bf16.msra.mxu0 %v1806
        %2482 = vmatpush.bf16.msra.mxu0 %v1802
        %2483 = vmatpush.bf16.msra.mxu0 %v1798
        %2484 = vmatpush.bf16.msra.mxu0 %v1794
        %2485 = vmatpush.bf16.msra.mxu0 %v1790
        %2486 = vmatmul.bf16.gmra.mxu0 %v786
        %v2487 = vpop.f32.mrf.mxu0
        %v2488 = vadd.f32 %v2475, %v2487
        %v2489 = vpop.f32.mrf.mxu0
        %2490 = vdwg.mxu0
        %v2495 = vrot.slane %v2280, 6
        %v2496 = vrot.slane %v2384, 4
        %v2497 = vrot.slane %v2488, 2
        %vm2498 = vcmask 1041408
        %v2499 = vsel %vm2498, %v2176, %v2495
        %vm2500 = vcmask 1045508
        %v2501 = vsel %vm2500, %v2496, %v2497
        %vm2502 = vcmask 1043456
        %v2503 = vsel %vm2502, %v2499, %v2501
        %v2505 = vadd.f32 %v519, %v2503
        %2506 = vst [vmem:[%s402] sm:$0xff] %v2505
        %s2507 = sand.u32 %s191, 1
        %s2508 = scalar_lea.sflag [#allocation5], %s2507
        %s2509 = sand.u32 %s191, 1
        %s2510 = smul.addr %s2509, 8
        %s2511 = scalar_lea.vmem [#allocation13], %s2510
        // Predicated region
        $region73: #{tpu_custom_call.1} parent=43 // pred_check
          %p2512 = pneg %p201
        $region74: #{tpu_custom_call.1} parent=43 // pred_check_branch
          %2514 = sbr.rel (%p2512) target = $region76
        $region75: #{tpu_custom_call.1} parent=43 // pred_region
          %s2515 = smul.u32 4, %s27
          %2517 = vsyncadd %s2508, 0
          %s2518 = smul.addr %s2515, 2
          %s2519 = scalar_lea.hbm %s6, %s2518
          %s2521 = sshll.u32 %s2511, 4
          %s2522 = int_to_ptr.vmem [resolvable:$true] %s2521
          %s2523 = sshll.u32 %s2519, 4
          %s2524 = int_to_ptr.hbm [resolvable:$true] %s2523
          %2526 = dma.vmem_to_hbm [thread:$0]  %s2522, 128, %s2524, %s2508
        $region76: #{tpu_custom_call.1} parent=43 // pred_fallthru
          _
      $region44: #{tpu_custom_call.1} parent=5 // pred_fallthru
        _
      %p2527 = scmp.le.s32.totalorder 2, %s18
      // Predicated region
      $region77: #{tpu_custom_call.1} parent=5 // pred_check
        %p2528 = pneg %p2527
      $region78: #{tpu_custom_call.1} parent=5 // pred_check_branch
        %2530 = sbr.rel (%p2528) target = $region80
      $region79: #{tpu_custom_call.1} parent=5 // pred_region
        %s2531 = ssub.s32 %s18, 2
        // Predicated region
        $region81: #{tpu_custom_call.1} parent=79 // pred_check
          %p2532 = pneg %p207
        $region82: #{tpu_custom_call.1} parent=79 // pred_check_branch
          %2534 = sbr.rel (%p2532) target = $region84
        $region83: #{tpu_custom_call.1} parent=79 // pred_region
          %s2535 = sand.u32 %s192, 1
          %s2536 = scalar_lea.sflag [#allocation5], %s2535
          %s2537 = sand.u32 %s192, 1
          %s2538 = smul.addr %s2537, 8
          %s2539 = scalar_lea.vmem [#allocation13], %s2538
          %2541 = dma.done %s2536, 128
        $region84: #{tpu_custom_call.1} parent=79 // pred_fallthru
          _
      $region80: #{tpu_custom_call.1} parent=5 // pred_fallthru
        _
    $region6: #{tpu_custom_call.1} parent=1 // loop_footer
      %s22 = sadd.s32 1, %s18
    $region7: #{tpu_custom_call.1} parent=1 // loop_footer_branch
      %17 = sbr.rel target = $region3
    $region8: #{tpu_custom_call.1} parent=1 // loop_exit
      _
    %2542 = vsyncpa [#allocation4], 1
    %s2543 = scalar_lea.sflag [#allocation4], 1
    %2544 = vsyncpa %s2543, 1
    %2545 = vsyncpa [#allocation7], 1
    %2546 = vsyncpa [#allocation10], 1
    %2547 = vsyncpa [#allocation5], 1
    %s2548 = scalar_lea.sflag [#allocation5], 1
    %2549 = vsyncpa %s2548, 1

</llo_original>
